<compile_context>
chip_gen: v7x
topology: tpu7x:2x2x1
jax: 0.10.0
libtpu: 0.0.40
codegen_flags: <defaults>
</compile_context>

<pallas_src>
import functools
import math

import jax
import jax.numpy as jnp
from jax.experimental import pallas as pl
from jax.experimental.pallas import tpu as pltpu


def _preln_mhsa_kernel(x_ref, g_ref, beta_ref, wqkv_ref, bqkv_ref, wo_ref,
                       bo_ref, o_ref, *, L, F, H, dk, M):
    """One batch element: pre-LN -> fused QKV -> per-head masked attention -> WO.

    x_ref:    (L, F)           input sequence (batch dim squeezed by BlockSpec)
    g_ref:    (1, F)           LayerNorm gamma
    beta_ref: (1, F)           LayerNorm beta
    wqkv_ref: (F, 3*H*dk)      packed [Q heads | K heads | V heads] weights
    bqkv_ref: (1, 3*H*dk)      packed biases
    wo_ref:   (H*dk, F)        output projection weight (already transposed)
    bo_ref:   (1, F)           output projection bias
    o_ref:    (L, F)           output
    """
    x = x_ref[...].astype(jnp.float32)

    # --- pre-LayerNorm (biased variance, eps=1e-5, same as nn.LayerNorm) ---
    mean = jnp.mean(x, axis=-1, keepdims=True)
    xc = x - mean
    var = jnp.mean(xc * xc, axis=-1, keepdims=True)
    xn = xc * jax.lax.rsqrt(var + 1e-5)
    xn = xn * g_ref[...] + beta_ref[...]

    # --- fused QKV projection for all heads: one (L,F)x(F,3*H*dk) MXU matmul ---
    qkv = jnp.dot(xn, wqkv_ref[...],
                  preferred_element_type=jnp.float32) + bqkv_ref[...]

    # --- additive mask built in-registers (matches the torch index pattern) ---
    # masked positions get -999999999 added before softmax.
    row = jax.lax.broadcasted_iota(jnp.int32, (L, L), 0)
    col = jax.lax.broadcasted_iota(jnp.int32, (L, L), 1)
    bnd = L - (M + 1)  # requires L > M + 1 (typical usage of the module)
    masked = ((row < bnd) & (col >= bnd)) | \
             ((row >= bnd) & (row < L - 1) & (col >= row))
    add_mask = jnp.where(masked, jnp.float32(-999999999.0), jnp.float32(0.0))

    scale = 1.0 / math.sqrt(dk)
    HD = H * dk
    z_parts = []
    for h in range(H):  # H is tiny & static -> unrolled
        qh = qkv[:, h * dk:(h + 1) * dk]                     # (L, dk)
        kh = qkv[:, HD + h * dk:HD + (h + 1) * dk]           # (L, dk)
        vh = qkv[:, 2 * HD + h * dk:2 * HD + (h + 1) * dk]   # (L, dk)

        s = jnp.einsum('qd,kd->qk', qh, kh,
                       preferred_element_type=jnp.float32) * scale
        s = s + add_mask
        # numerically-stable softmax over the key axis
        s = s - jnp.max(s, axis=-1, keepdims=True)
        p = jnp.exp(s)
        p = p / jnp.sum(p, axis=-1, keepdims=True)

        z_parts.append(jnp.dot(p, vh, preferred_element_type=jnp.float32))

    z = jnp.concatenate(z_parts, axis=-1)                    # (L, H*dk)

    out = jnp.dot(z, wo_ref[...],
                  preferred_element_type=jnp.float32) + bo_ref[...]
    o_ref[...] = out.astype(o_ref.dtype)


def preln_self_attention(x, packed, *, multiNum, dk, maxItems):
    """x: (B, L, F) f32; packed = (gamma(1,F), beta(1,F), wqkv(F,3*H*dk),
    bqkv(1,3*H*dk), wo_t(H*dk,F), bo(1,F))."""
    gamma2, beta2, wqkv, bqkv, wo_t, bo2 = packed
    B, L, F = x.shape
    HD = multiNum * dk

    kernel = functools.partial(_preln_mhsa_kernel, L=L, F=F, H=multiNum,
                               dk=dk, M=maxItems)

    return pl.pallas_call(
        kernel,
        out_shape=jax.ShapeDtypeStruct((B, L, F), jnp.float32),
        grid_spec=pltpu.PrefetchScalarGridSpec(
            num_scalar_prefetch=0,
            grid=(B,),
            in_specs=[
                pl.BlockSpec((None, L, F), lambda b: (b, 0, 0)),   # x (batch squeezed)
                pl.BlockSpec((1, F), lambda b: (0, 0)),            # gamma  (resident)
                pl.BlockSpec((1, F), lambda b: (0, 0)),            # beta   (resident)
                pl.BlockSpec((F, 3 * HD), lambda b: (0, 0)),       # Wqkv   (resident)
                pl.BlockSpec((1, 3 * HD), lambda b: (0, 0)),       # bqkv   (resident)
                pl.BlockSpec((HD, F), lambda b: (0, 0)),           # Wo^T   (resident)
                pl.BlockSpec((1, F), lambda b: (0, 0)),            # bo     (resident)
            ],
            out_specs=pl.BlockSpec((None, L, F), lambda b: (b, 0, 0)),
        ),
        compiler_params=pltpu.CompilerParams(
            dimension_semantics=("parallel",)),
    )(x, gamma2, beta2, wqkv, bqkv, wo_t, bo2)


# ----------------------------- parameter helpers -----------------------------

def init_raw_params(key, featureSize, dk, multiNum):
    """Per-head PyTorch-layout params (Linear weight is (out, in))."""
    F = featureSize
    keys = jax.random.split(key, 6)

    def lin(k, n_out, n_in):
        kw, kb = jax.random.split(k)
        w = 0.1 * jax.random.normal(kw, (n_out, n_in), jnp.float32)
        b = 0.1 * jax.random.normal(kb, (n_out,), jnp.float32)
        return w, b

    gamma = 1.0 + 0.1 * jax.random.normal(keys[0], (F,), jnp.float32)
    beta = 0.1 * jax.random.normal(keys[1], (F,), jnp.float32)

    wq, bq, wk, bk, wv, bv = [], [], [], [], [], []
    for h in range(multiNum):
        w, b = lin(jax.random.fold_in(keys[2], h), dk, F); wq.append(w); bq.append(b)
        w, b = lin(jax.random.fold_in(keys[3], h), dk, F); wk.append(w); bk.append(b)
        w, b = lin(jax.random.fold_in(keys[4], h), dk, F); wv.append(w); bv.append(b)
    wo, bo = lin(keys[5], F, multiNum * dk)
    return gamma, beta, wq, bq, wk, bk, wv, bv, wo, bo


def pack_params(raw):
    """Glue: pack per-head Linears into one (F, 3*H*dk) matmul weight."""
    gamma, beta, wq, bq, wk, bk, wv, bv, wo, bo = raw
    F = gamma.shape[0]
    wq_all = jnp.concatenate([w.T for w in wq], axis=1)   # (F, H*dk)
    wk_all = jnp.concatenate([w.T for w in wk], axis=1)
    wv_all = jnp.concatenate([w.T for w in wv], axis=1)
    wqkv = jnp.concatenate([wq_all, wk_all, wv_all], axis=1)          # (F, 3*H*dk)
    bqkv = jnp.concatenate(list(bq) + list(bk) + list(bv)).reshape(1, -1)
    return (gamma.reshape(1, F), beta.reshape(1, F), wqkv, bqkv,
            wo.T, bo.reshape(1, F))


# ----------------------------- plain-JAX reference ---------------------------

def _reference_forward(x, raw, maxItems):
    """Mirrors the PyTorch module semantics exactly (for a sanity check)."""
    gamma, beta, wq, bq, wk, bk, wv, bv, wo, bo = raw
    B, L, F = x.shape
    dk = wq[0].shape[0]

    mean = jnp.mean(x, axis=-1, keepdims=True)
    var = jnp.mean((x - mean) ** 2, axis=-1, keepdims=True)
    xn = (x - mean) / jnp.sqrt(var + 1e-5) * gamma + beta

    bnd = L - (maxItems + 1)
    mask = jnp.zeros((L, L), jnp.float32)
    mask = mask.at[:bnd, bnd:].set(-999999999.0)
    for j in range(maxItems):
        r = bnd + j
        mask = mask.at[r, r:].set(-999999999.0)

    zs = []
    for h in range(len(wq)):
        q = xn @ wq[h].T + bq[h]
        k = xn @ wk[h].T + bk[h]
        v = xn @ wv[h].T + bv[h]
        s = jnp.einsum('bqd,bkd->bqk', q, k) / math.sqrt(dk) + mask
        p = jax.nn.softmax(s, axis=-1)
        zs.append(jnp.einsum('bqk,bkd->bqd', p, v))
    z = jnp.concatenate(zs, axis=-1)
    return z @ wo.T + bo


if __name__ == "__main__":
    B, L = 2, 16
    featureSize, dk, multiNum, maxItems = 32, 8, 4, 4   # L > maxItems + 1

    key = jax.random.PRNGKey(0)
    kx, kp = jax.random.split(key)
    x = jax.random.normal(kx, (B, L, featureSize), jnp.float32)

    raw = init_raw_params(kp, featureSize, dk, multiNum)
    packed = pack_params(raw)

    out = jax.block_until_ready(
        preln_self_attention(x, packed, multiNum=multiNum, dk=dk,
                             maxItems=maxItems))
    ref = jax.block_until_ready(_reference_forward(x, raw, maxItems))

    assert out.shape == (B, L, featureSize), out.shape
    assert jnp.allclose(out, ref, atol=1e-4, rtol=1e-4), "mismatch vs reference"
    print("KERNEL_OK")
</pallas_src>

<mosaic_0001>
module attributes {stable_mosaic.version = 11 : i64} {
  func.func @_preln_mhsa_kernel(%arg0: i32, %arg1: memref<1x16x32xf32, #tpu.memory_space<vmem>>, %arg2: memref<1x32xf32, #tpu.memory_space<vmem>>, %arg3: memref<1x32xf32, #tpu.memory_space<vmem>>, %arg4: memref<32x96xf32, #tpu.memory_space<vmem>>, %arg5: memref<1x96xf32, #tpu.memory_space<vmem>>, %arg6: memref<32x32xf32, #tpu.memory_space<vmem>>, %arg7: memref<1x32xf32, #tpu.memory_space<vmem>>, %arg8: memref<1x16x32xf32, #tpu.memory_space<vmem>>) attributes {dimension_semantics = [#tpu.dimension_semantics<parallel>], iteration_bounds = array<i64: 2>, scalar_prefetch = 0 : i64, scratch_operands = 0 : i64, tpu.core_type = #tpu.core_type<tc>, window_params = [{transform_indices = @transform_0, window_bounds = array<i64: 1, 16, 32>}, {pipeline_mode = #tpu.pipeline_mode<synchronous>, transform_indices = @transform_1, window_bounds = array<i64: 1, 32>}, {pipeline_mode = #tpu.pipeline_mode<synchronous>, transform_indices = @transform_2, window_bounds = array<i64: 1, 32>}, {pipeline_mode = #tpu.pipeline_mode<synchronous>, transform_indices = @transform_3, window_bounds = array<i64: 32, 96>}, {pipeline_mode = #tpu.pipeline_mode<synchronous>, transform_indices = @transform_4, window_bounds = array<i64: 1, 96>}, {pipeline_mode = #tpu.pipeline_mode<synchronous>, transform_indices = @transform_5, window_bounds = array<i64: 32, 32>}, {pipeline_mode = #tpu.pipeline_mode<synchronous>, transform_indices = @transform_6, window_bounds = array<i64: 1, 32>}, {transform_indices = @transform_7, window_bounds = array<i64: 1, 16, 32>}]} {
    %c0 = arith.constant 0 : index
    %c0_0 = arith.constant 0 : index
    %c0_1 = arith.constant 0 : index
    %0 = vector.load %arg1[%c0, %c0_0, %c0_1] : memref<1x16x32xf32, #tpu.memory_space<vmem>>, vector<1x16x32xf32>
    %1 = vector.shape_cast %0 : vector<1x16x32xf32> to vector<16x32xf32>
    %cst = arith.constant dense<0.000000e+00> : vector<16xf32>
    %2 = vector.multi_reduction <add>, %1, %cst [1] : vector<16x32xf32> to vector<16xf32>
    %3 = vector.shape_cast %2 : vector<16xf32> to vector<16x1xf32>
    %cst_2 = arith.constant 3.200000e+01 : f32
    %4 = vector.broadcast %cst_2 : f32 to vector<16x1xf32>
    %5 = arith.divf %3, %4 : vector<16x1xf32>
    %6 = vector.broadcast %5 : vector<16x1xf32> to vector<16x32xf32>
    %7 = arith.subf %1, %6 : vector<16x32xf32>
    %8 = arith.mulf %7, %7 : vector<16x32xf32>
    %cst_3 = arith.constant dense<0.000000e+00> : vector<16xf32>
    %9 = vector.multi_reduction <add>, %8, %cst_3 [1] : vector<16x32xf32> to vector<16xf32>
    %10 = vector.shape_cast %9 : vector<16xf32> to vector<16x1xf32>
    %cst_4 = arith.constant 3.200000e+01 : f32
    %11 = vector.broadcast %cst_4 : f32 to vector<16x1xf32>
    %12 = arith.divf %10, %11 : vector<16x1xf32>
    %cst_5 = arith.constant 9.99999974E-6 : f32
    %13 = vector.broadcast %cst_5 : f32 to vector<16x1xf32>
    %14 = arith.addf %12, %13 : vector<16x1xf32>
    %15 = math.rsqrt %14 : vector<16x1xf32>
    %16 = vector.broadcast %15 : vector<16x1xf32> to vector<16x32xf32>
    %17 = arith.mulf %7, %16 : vector<16x32xf32>
    %c0_6 = arith.constant 0 : index
    %c0_7 = arith.constant 0 : index
    %18 = vector.load %arg2[%c0_6, %c0_7] : memref<1x32xf32, #tpu.memory_space<vmem>>, vector<1x32xf32>
    %19 = vector.broadcast %18 : vector<1x32xf32> to vector<16x32xf32>
    %20 = arith.mulf %17, %19 : vector<16x32xf32>
    %c0_8 = arith.constant 0 : index
    %c0_9 = arith.constant 0 : index
    %21 = vector.load %arg3[%c0_8, %c0_9] : memref<1x32xf32, #tpu.memory_space<vmem>>, vector<1x32xf32>
    %22 = vector.broadcast %21 : vector<1x32xf32> to vector<16x32xf32>
    %23 = arith.addf %20, %22 : vector<16x32xf32>
    %c0_10 = arith.constant 0 : index
    %c0_11 = arith.constant 0 : index
    %24 = vector.load %arg4[%c0_10, %c0_11] : memref<32x96xf32, #tpu.memory_space<vmem>>, vector<32x96xf32>
    %cst_12 = arith.constant dense<0.000000e+00> : vector<16x96xf32>
    %25 = tpu.matmul %23, %24, %cst_12 {dimension_numbers = #tpu.dot_dimension_numbers<[1], [0], [0], [1], [0, 0, 1, 1], [], []>} : vector<16x32xf32>, vector<32x96xf32>, vector<16x96xf32> -> vector<16x96xf32>
    %c0_13 = arith.constant 0 : index
    %c0_14 = arith.constant 0 : index
    %26 = vector.load %arg5[%c0_13, %c0_14] : memref<1x96xf32, #tpu.memory_space<vmem>>, vector<1x96xf32>
    %27 = vector.broadcast %26 : vector<1x96xf32> to vector<16x96xf32>
    %28 = arith.addf %25, %27 : vector<16x96xf32>
    %29 = tpu.iota {dimensions = array<i32: 0>} : vector<16x16xi32>
    %30 = tpu.iota {dimensions = array<i32: 1>} : vector<16x16xi32>
    %c11_i32 = arith.constant 11 : i32
    %31 = vector.broadcast %c11_i32 : i32 to vector<16x16xi32>
    %32 = arith.cmpi slt, %29, %31 : vector<16x16xi32>
    %c11_i32_15 = arith.constant 11 : i32
    %33 = vector.broadcast %c11_i32_15 : i32 to vector<16x16xi32>
    %34 = arith.cmpi sge, %30, %33 : vector<16x16xi32>
    %35 = arith.andi %32, %34 : vector<16x16xi1>
    %c11_i32_16 = arith.constant 11 : i32
    %36 = vector.broadcast %c11_i32_16 : i32 to vector<16x16xi32>
    %37 = arith.cmpi sge, %29, %36 : vector<16x16xi32>
    %c15_i32 = arith.constant 15 : i32
    %38 = vector.broadcast %c15_i32 : i32 to vector<16x16xi32>
    %39 = arith.cmpi slt, %29, %38 : vector<16x16xi32>
    %40 = arith.andi %37, %39 : vector<16x16xi1>
    %41 = arith.cmpi sge, %30, %29 : vector<16x16xi32>
    %42 = arith.andi %40, %41 : vector<16x16xi1>
    %43 = arith.ori %35, %42 : vector<16x16xi1>
    %cst_17 = arith.constant -1.000000e+09 : f32
    %cst_18 = arith.constant 0.000000e+00 : f32
    %44 = vector.broadcast %cst_17 : f32 to vector<16x16xf32>
    %45 = vector.broadcast %cst_18 : f32 to vector<16x16xf32>
    %46 = arith.select %43, %44, %45 : vector<16x16xi1>, vector<16x16xf32>
    %47 = vector.extract_strided_slice %28 {offsets = [0, 0], sizes = [16, 8], strides = [1, 1]} : vector<16x96xf32> to vector<16x8xf32>
    %48 = vector.extract_strided_slice %28 {offsets = [0, 32], sizes = [16, 8], strides = [1, 1]} : vector<16x96xf32> to vector<16x8xf32>
    %49 = vector.extract_strided_slice %28 {offsets = [0, 64], sizes = [16, 8], strides = [1, 1]} : vector<16x96xf32> to vector<16x8xf32>
    "tpu.trace_start"() <{level = 10 : i32, message = "qd,kd->qk"}> : () -> ()
    %cst_19 = arith.constant dense<0.000000e+00> : vector<16x16xf32>
    %50 = tpu.matmul %47, %48, %cst_19 {dimension_numbers = #tpu.dot_dimension_numbers<[1], [1], [0], [0], [0, 0, 1, 0], [], []>} : vector<16x8xf32>, vector<16x8xf32>, vector<16x16xf32> -> vector<16x16xf32>
    "tpu.trace_stop"() : () -> ()
    %cst_20 = arith.constant 0.353553385 : f32
    %51 = vector.broadcast %cst_20 : f32 to vector<16x16xf32>
    %52 = arith.mulf %50, %51 : vector<16x16xf32>
    %53 = arith.addf %52, %46 : vector<16x16xf32>
    %cst_21 = arith.constant dense<0xFF800000> : vector<16xf32>
    %54 = vector.multi_reduction <maximumf>, %53, %cst_21 [1] : vector<16x16xf32> to vector<16xf32>
    %55 = vector.shape_cast %54 : vector<16xf32> to vector<16x1xf32>
    %56 = vector.broadcast %55 : vector<16x1xf32> to vector<16x16xf32>
    %57 = arith.subf %53, %56 : vector<16x16xf32>
    %58 = math.exp %57 : vector<16x16xf32>
    %cst_22 = arith.constant dense<0.000000e+00> : vector<16xf32>
    %59 = vector.multi_reduction <add>, %58, %cst_22 [1] : vector<16x16xf32> to vector<16xf32>
    %60 = vector.shape_cast %59 : vector<16xf32> to vector<16x1xf32>
    %61 = vector.broadcast %60 : vector<16x1xf32> to vector<16x16xf32>
    %62 = arith.divf %58, %61 : vector<16x16xf32>
    %cst_23 = arith.constant dense<0.000000e+00> : vector<16x8xf32>
    %63 = tpu.matmul %62, %49, %cst_23 {dimension_numbers = #tpu.dot_dimension_numbers<[1], [0], [0], [1], [0, 0, 1, 1], [], []>} : vector<16x16xf32>, vector<16x8xf32>, vector<16x8xf32> -> vector<16x8xf32>
    %64 = vector.extract_strided_slice %28 {offsets = [0, 8], sizes = [16, 8], strides = [1, 1]} : vector<16x96xf32> to vector<16x8xf32>
    %65 = vector.extract_strided_slice %28 {offsets = [0, 40], sizes = [16, 8], strides = [1, 1]} : vector<16x96xf32> to vector<16x8xf32>
    %66 = vector.extract_strided_slice %28 {offsets = [0, 72], sizes = [16, 8], strides = [1, 1]} : vector<16x96xf32> to vector<16x8xf32>
    "tpu.trace_start"() <{level = 10 : i32, message = "qd,kd->qk"}> : () -> ()
    %cst_24 = arith.constant dense<0.000000e+00> : vector<16x16xf32>
    %67 = tpu.matmul %64, %65, %cst_24 {dimension_numbers = #tpu.dot_dimension_numbers<[1], [1], [0], [0], [0, 0, 1, 0], [], []>} : vector<16x8xf32>, vector<16x8xf32>, vector<16x16xf32> -> vector<16x16xf32>
    "tpu.trace_stop"() : () -> ()
    %cst_25 = arith.constant 0.353553385 : f32
    %68 = vector.broadcast %cst_25 : f32 to vector<16x16xf32>
    %69 = arith.mulf %67, %68 : vector<16x16xf32>
    %70 = arith.addf %69, %46 : vector<16x16xf32>
    %cst_26 = arith.constant dense<0xFF800000> : vector<16xf32>
    %71 = vector.multi_reduction <maximumf>, %70, %cst_26 [1] : vector<16x16xf32> to vector<16xf32>
    %72 = vector.shape_cast %71 : vector<16xf32> to vector<16x1xf32>
    %73 = vector.broadcast %72 : vector<16x1xf32> to vector<16x16xf32>
    %74 = arith.subf %70, %73 : vector<16x16xf32>
    %75 = math.exp %74 : vector<16x16xf32>
    %cst_27 = arith.constant dense<0.000000e+00> : vector<16xf32>
    %76 = vector.multi_reduction <add>, %75, %cst_27 [1] : vector<16x16xf32> to vector<16xf32>
    %77 = vector.shape_cast %76 : vector<16xf32> to vector<16x1xf32>
    %78 = vector.broadcast %77 : vector<16x1xf32> to vector<16x16xf32>
    %79 = arith.divf %75, %78 : vector<16x16xf32>
    %cst_28 = arith.constant dense<0.000000e+00> : vector<16x8xf32>
    %80 = tpu.matmul %79, %66, %cst_28 {dimension_numbers = #tpu.dot_dimension_numbers<[1], [0], [0], [1], [0, 0, 1, 1], [], []>} : vector<16x16xf32>, vector<16x8xf32>, vector<16x8xf32> -> vector<16x8xf32>
    %81 = vector.extract_strided_slice %28 {offsets = [0, 16], sizes = [16, 8], strides = [1, 1]} : vector<16x96xf32> to vector<16x8xf32>
    %82 = vector.extract_strided_slice %28 {offsets = [0, 48], sizes = [16, 8], strides = [1, 1]} : vector<16x96xf32> to vector<16x8xf32>
    %83 = vector.extract_strided_slice %28 {offsets = [0, 80], sizes = [16, 8], strides = [1, 1]} : vector<16x96xf32> to vector<16x8xf32>
    "tpu.trace_start"() <{level = 10 : i32, message = "qd,kd->qk"}> : () -> ()
    %cst_29 = arith.constant dense<0.000000e+00> : vector<16x16xf32>
    %84 = tpu.matmul %81, %82, %cst_29 {dimension_numbers = #tpu.dot_dimension_numbers<[1], [1], [0], [0], [0, 0, 1, 0], [], []>} : vector<16x8xf32>, vector<16x8xf32>, vector<16x16xf32> -> vector<16x16xf32>
    "tpu.trace_stop"() : () -> ()
    %cst_30 = arith.constant 0.353553385 : f32
    %85 = vector.broadcast %cst_30 : f32 to vector<16x16xf32>
    %86 = arith.mulf %84, %85 : vector<16x16xf32>
    %87 = arith.addf %86, %46 : vector<16x16xf32>
    %cst_31 = arith.constant dense<0xFF800000> : vector<16xf32>
    %88 = vector.multi_reduction <maximumf>, %87, %cst_31 [1] : vector<16x16xf32> to vector<16xf32>
    %89 = vector.shape_cast %88 : vector<16xf32> to vector<16x1xf32>
    %90 = vector.broadcast %89 : vector<16x1xf32> to vector<16x16xf32>
    %91 = arith.subf %87, %90 : vector<16x16xf32>
    %92 = math.exp %91 : vector<16x16xf32>
    %cst_32 = arith.constant dense<0.000000e+00> : vector<16xf32>
    %93 = vector.multi_reduction <add>, %92, %cst_32 [1] : vector<16x16xf32> to vector<16xf32>
    %94 = vector.shape_cast %93 : vector<16xf32> to vector<16x1xf32>
    %95 = vector.broadcast %94 : vector<16x1xf32> to vector<16x16xf32>
    %96 = arith.divf %92, %95 : vector<16x16xf32>
    %cst_33 = arith.constant dense<0.000000e+00> : vector<16x8xf32>
    %97 = tpu.matmul %96, %83, %cst_33 {dimension_numbers = #tpu.dot_dimension_numbers<[1], [0], [0], [1], [0, 0, 1, 1], [], []>} : vector<16x16xf32>, vector<16x8xf32>, vector<16x8xf32> -> vector<16x8xf32>
    %98 = vector.extract_strided_slice %28 {offsets = [0, 24], sizes = [16, 8], strides = [1, 1]} : vector<16x96xf32> to vector<16x8xf32>
    %99 = vector.extract_strided_slice %28 {offsets = [0, 56], sizes = [16, 8], strides = [1, 1]} : vector<16x96xf32> to vector<16x8xf32>
    %100 = vector.extract_strided_slice %28 {offsets = [0, 88], sizes = [16, 8], strides = [1, 1]} : vector<16x96xf32> to vector<16x8xf32>
    "tpu.trace_start"() <{level = 10 : i32, message = "qd,kd->qk"}> : () -> ()
    %cst_34 = arith.constant dense<0.000000e+00> : vector<16x16xf32>
    %101 = tpu.matmul %98, %99, %cst_34 {dimension_numbers = #tpu.dot_dimension_numbers<[1], [1], [0], [0], [0, 0, 1, 0], [], []>} : vector<16x8xf32>, vector<16x8xf32>, vector<16x16xf32> -> vector<16x16xf32>
    "tpu.trace_stop"() : () -> ()
    %cst_35 = arith.constant 0.353553385 : f32
    %102 = vector.broadcast %cst_35 : f32 to vector<16x16xf32>
    %103 = arith.mulf %101, %102 : vector<16x16xf32>
    %104 = arith.addf %103, %46 : vector<16x16xf32>
    %cst_36 = arith.constant dense<0xFF800000> : vector<16xf32>
    %105 = vector.multi_reduction <maximumf>, %104, %cst_36 [1] : vector<16x16xf32> to vector<16xf32>
    %106 = vector.shape_cast %105 : vector<16xf32> to vector<16x1xf32>
    %107 = vector.broadcast %106 : vector<16x1xf32> to vector<16x16xf32>
    %108 = arith.subf %104, %107 : vector<16x16xf32>
    %109 = math.exp %108 : vector<16x16xf32>
    %cst_37 = arith.constant dense<0.000000e+00> : vector<16xf32>
    %110 = vector.multi_reduction <add>, %109, %cst_37 [1] : vector<16x16xf32> to vector<16xf32>
    %111 = vector.shape_cast %110 : vector<16xf32> to vector<16x1xf32>
    %112 = vector.broadcast %111 : vector<16x1xf32> to vector<16x16xf32>
    %113 = arith.divf %109, %112 : vector<16x16xf32>
    %cst_38 = arith.constant dense<0.000000e+00> : vector<16x8xf32>
    %114 = tpu.matmul %113, %100, %cst_38 {dimension_numbers = #tpu.dot_dimension_numbers<[1], [0], [0], [1], [0, 0, 1, 1], [], []>} : vector<16x16xf32>, vector<16x8xf32>, vector<16x8xf32> -> vector<16x8xf32>
    %115 = tpu.concatenate %63, %80, %97, %114 in 1 : vector<16x8xf32>, vector<16x8xf32>, vector<16x8xf32>, vector<16x8xf32> -> vector<16x32xf32>
    %c0_39 = arith.constant 0 : index
    %c0_40 = arith.constant 0 : index
    %116 = vector.load %arg6[%c0_39, %c0_40] : memref<32x32xf32, #tpu.memory_space<vmem>>, vector<32x32xf32>
    %cst_41 = arith.constant dense<0.000000e+00> : vector<16x32xf32>
    %117 = tpu.matmul %115, %116, %cst_41 {dimension_numbers = #tpu.dot_dimension_numbers<[1], [0], [0], [1], [0, 0, 1, 1], [], []>} : vector<16x32xf32>, vector<32x32xf32>, vector<16x32xf32> -> vector<16x32xf32>
    %c0_42 = arith.constant 0 : index
    %c0_43 = arith.constant 0 : index
    %118 = vector.load %arg7[%c0_42, %c0_43] : memref<1x32xf32, #tpu.memory_space<vmem>>, vector<1x32xf32>
    %119 = vector.broadcast %118 : vector<1x32xf32> to vector<16x32xf32>
    %120 = arith.addf %117, %119 : vector<16x32xf32>
    %c0_44 = arith.constant 0 : index
    %c0_45 = arith.constant 0 : index
    %c0_46 = arith.constant 0 : index
    %121 = vector.load %arg8[%c0_44, %c0_45, %c0_46] : memref<1x16x32xf32, #tpu.memory_space<vmem>>, vector<1x16x32xf32>
    %122 = vector.shape_cast %121 : vector<1x16x32xf32> to vector<16x32xf32>
    %123 = vector.shape_cast %120 : vector<16x32xf32> to vector<1x16x32xf32>
    tpu.vector_store %arg8[%c0_44, %c0_45, %c0_46], %123 {strides = array<i32>} : memref<1x16x32xf32, #tpu.memory_space<vmem>>, vector<1x16x32xf32>,
    return
  }
  func.func @transform_0(%arg0: i32) -> (i32, i32, i32) {
    %c0_i32 = arith.constant 0 : i32
    %c0_i32_0 = arith.constant 0 : i32
    %c0_i32_1 = arith.constant 0 : i32
    return %arg0, %c0_i32, %c0_i32_0 : i32, i32, i32
  }
  func.func @transform_1(%arg0: i32) -> (i32, i32) {
    %c0_i32 = arith.constant 0 : i32
    %c0_i32_0 = arith.constant 0 : i32
    %c0_i32_1 = arith.constant 0 : i32
    return %c0_i32, %c0_i32_0 : i32, i32
  }
  func.func @transform_2(%arg0: i32) -> (i32, i32) {
    %c0_i32 = arith.constant 0 : i32
    %c0_i32_0 = arith.constant 0 : i32
    %c0_i32_1 = arith.constant 0 : i32
    return %c0_i32, %c0_i32_0 : i32, i32
  }
  func.func @transform_3(%arg0: i32) -> (i32, i32) {
    %c0_i32 = arith.constant 0 : i32
    %c0_i32_0 = arith.constant 0 : i32
    %c0_i32_1 = arith.constant 0 : i32
    return %c0_i32, %c0_i32_0 : i32, i32
  }
  func.func @transform_4(%arg0: i32) -> (i32, i32) {
    %c0_i32 = arith.constant 0 : i32
    %c0_i32_0 = arith.constant 0 : i32
    %c0_i32_1 = arith.constant 0 : i32
    return %c0_i32, %c0_i32_0 : i32, i32
  }
  func.func @transform_5(%arg0: i32) -> (i32, i32) {
    %c0_i32 = arith.constant 0 : i32
    %c0_i32_0 = arith.constant 0 : i32
    %c0_i32_1 = arith.constant 0 : i32
    return %c0_i32, %c0_i32_0 : i32, i32
  }
  func.func @transform_6(%arg0: i32) -> (i32, i32) {
    %c0_i32 = arith.constant 0 : i32
    %c0_i32_0 = arith.constant 0 : i32
    %c0_i32_1 = arith.constant 0 : i32
    return %c0_i32, %c0_i32_0 : i32, i32
  }
  func.func @transform_7(%arg0: i32) -> (i32, i32, i32) {
    %c0_i32 = arith.constant 0 : i32
    %c0_i32_0 = arith.constant 0 : i32
    %c0_i32_1 = arith.constant 0 : i32
    return %arg0, %c0_i32, %c0_i32_0 : i32, i32, i32
  }
}

</mosaic_0001>

<llo_original>
// kernel: tpu_custom_call.1
$region0: #{tpu_custom_call.1}
  #allocation0 [shape = 'u32[]', space=smem, size = 0x4, offset = 0x4, fixed_abs, tag = 'smem constant byte address 0x4 - core index']
  #allocation1 [shape = 'u32[144,128]{1,0:T(1,128)}', space=vmem, size = 0x12000, scoped, tag = 'internal scratch']
  %s0 = inlined_call_operand.hbm [shape: f32[2,16,32], index: 0, kind: input, shape index: {}]
  %s1 = inlined_call_operand.vmem [shape: f32[1,32], index: 1, kind: input, shape index: {}]
  %s2 = inlined_call_operand.vmem [shape: f32[1,32], index: 2, kind: input, shape index: {}]
  %s3 = inlined_call_operand.hbm [shape: f32[32,96], index: 3, kind: input, shape index: {}]
  %s4 = inlined_call_operand.vmem [shape: f32[1,96], index: 4, kind: input, shape index: {}]
  %s5 = inlined_call_operand.hbm [shape: f32[32,32], index: 5, kind: input, shape index: {}]
  %s6 = inlined_call_operand.vmem [shape: f32[1,32], index: 6, kind: input, shape index: {}]
  %s7 = inlined_call_operand.hbm [shape: f32[2,16,32], index: 7, kind: output, shape index: {}]
  %s8 = sld [smem:[#allocation0]]
  $region73: #{tpu_custom_call.1} parent=0
    _
  %s10 = ssub.s32 1, %s8
  %s11 = scalar_select 0, %s10, %s8
  $region1: #{tpu_custom_call.1} parent=0
    #allocation2 [shape = 'u8[16384]{0}', space=vmem, size = 0x4000, scoped, tag = 'input window, operand 0']
    #allocation3 [shape = 's32[2]{0}', space=sflag, size = 0x8, scoped, tag = 'scoped memory for tpu_custom_call.1']
    #allocation4 [shape = 's32[2]{0}', space=sflag, size = 0x8, scoped, tag = 'scoped memory for tpu_custom_call.1']
    #allocation5 [shape = 'u8[16384]{0}', space=vmem, size = 0x4000, scoped, tag = 'input window, operand 3, single buffered']
    #allocation6 [shape = 's32[1]{0}', space=sflag, size = 0x4, scoped, tag = 'scoped memory for tpu_custom_call.1']
    #allocation7 [shape = 'u8[16384]{0}', space=vmem, size = 0x4000, scoped, tag = 'input window, operand 5, single buffered']
    #allocation8 [shape = 'u8[16384]{0}', space=vmem, size = 0x4000, scoped, tag = 'output window, operand 0']
    %12 = vsyncpa [#allocation3], 0
    %s13 = scalar_lea.sflag [#allocation3], 1
    %14 = vsyncpa %s13, 0
    %15 = vsyncpa [#allocation6], 0
    %16 = vsyncpa [#allocation4], 0
    %s17 = scalar_lea.sflag [#allocation4], 1
    %18 = vsyncpa %s17, 0
    loop: start=0, step=1, limit=4
    $region2: #{tpu_custom_call.1} parent=1 // loop_pre_header
      _
    $region3: #{tpu_custom_call.1} parent=1 // loop_header
      %s20 = sphi 0, %s24
      %p21 = scmp.ge.s32.totalorder %s20, 4
      %s30 = sphi 0, %s32
      %s33 = sphi 0, %s30
      %s34 = sphi 0, %s33
      %s50 = sphi 0, %s34
      %s54 = sphi 0, %s54
      %s56 = sphi 0, %s54
      %s57 = sphi 0, %s56
      %s71 = sphi 0, %s57
      %s75 = sphi 0, %s75
      %s77 = sphi 0, %s75
      %s78 = sphi 0, %s77
      %s92 = sphi 0, %s78
      %s96 = sphi 0, %s96
      %s98 = sphi 0, %s96
      %s99 = sphi 0, %s98
      %s113 = sphi 0, %s99
      %s117 = sphi 0, %s117
      %s119 = sphi 0, %s117
      %s120 = sphi 0, %s119
      %s134 = sphi 0, %s120
      %s138 = sphi 0, %s138
      %s140 = sphi 0, %s138
      %s141 = sphi 0, %s140
      %s155 = sphi 0, %s141
      %s159 = sphi 0, %s159
      %s161 = sphi 0, %s159
      %s162 = sphi 0, %s161
      %s176 = sphi 0, %s162
      %s182 = sphi 0, %s184
      %s185 = sphi 0, %s182
      %s186 = sphi 0, %s185
      %s202 = sphi 0, %s186
    $region4: #{tpu_custom_call.1} parent=1 // loop_header_branch
      %23 = sbr.rel (%p21) target = $region8
    $region5: #{tpu_custom_call.1} parent=1 // loop_body
      %s25 = ssub.s32 %s20, 1
      %s26 = ssub.s32 %s20, 2
      %s27 = sadd.s32 %s20, 1
      %s28 = ssub.s32 %s20, %s27
      %p29 = scmp.eq.s32.totalorder %s28, 0
      %s31 = sadd.s32 %s30, 1
      %s32 = scalar_select %p29, %s30, %s31
      %p35 = pneg %p29
      %p36 = scmp.eq.s32.totalorder %s20, 1
      %p37 = por %p35, %p36
      %p38 = scmp.ne.s32.totalorder %s30, %s33
      %p39 = scmp.eq.s32.totalorder %s20, 0
      %p40 = por %p38, %p39
      %p41 = scmp.ne.s32.totalorder %s30, %s33
      %p42 = scmp.eq.s32.totalorder %s25, 1
      %p43 = por %p41, %p42
      %p44 = scmp.ne.s32.totalorder %s33, %s34
      %p45 = scmp.eq.s32.totalorder %s25, 0
      %p46 = por %p44, %p45
      %p47 = scmp.ne.s32.totalorder %s33, %s34
      %p48 = scmp.eq.s32.totalorder %s26, 1
      %p49 = por %p47, %p48
      %p51 = scmp.ne.s32.totalorder %s34, %s50
      %p52 = scmp.eq.s32.totalorder %s26, 0
      %p53 = por %p51, %p52
      %s55 = sadd.s32 %s54, 1
      %p58 = scmp.eq.s32.totalorder %s20, 1
      %p59 = scmp.ne.s32.totalorder %s54, %s56
      %p60 = scmp.eq.s32.totalorder %s20, 0
      %p61 = por %p59, %p60
      %p62 = scmp.ne.s32.totalorder %s54, %s56
      %p63 = scmp.eq.s32.totalorder %s25, 1
      %p64 = por %p62, %p63
      %p65 = scmp.ne.s32.totalorder %s56, %s57
      %p66 = scmp.eq.s32.totalorder %s25, 0
      %p67 = por %p65, %p66
      %p68 = scmp.ne.s32.totalorder %s56, %s57
      %p69 = scmp.eq.s32.totalorder %s26, 1
      %p70 = por %p68, %p69
      %p72 = scmp.ne.s32.totalorder %s57, %s71
      %p73 = scmp.eq.s32.totalorder %s26, 0
      %p74 = por %p72, %p73
      %s76 = sadd.s32 %s75, 1
      %p79 = scmp.eq.s32.totalorder %s20, 1
      %p80 = scmp.ne.s32.totalorder %s75, %s77
      %p81 = scmp.eq.s32.totalorder %s20, 0
      %p82 = por %p80, %p81
      %p83 = scmp.ne.s32.totalorder %s75, %s77
      %p84 = scmp.eq.s32.totalorder %s25, 1
      %p85 = por %p83, %p84
      %p86 = scmp.ne.s32.totalorder %s77, %s78
      %p87 = scmp.eq.s32.totalorder %s25, 0
      %p88 = por %p86, %p87
      %p89 = scmp.ne.s32.totalorder %s77, %s78
      %p90 = scmp.eq.s32.totalorder %s26, 1
      %p91 = por %p89, %p90
      %p93 = scmp.ne.s32.totalorder %s78, %s92
      %p94 = scmp.eq.s32.totalorder %s26, 0
      %p95 = por %p93, %p94
      %s97 = sadd.s32 %s96, 1
      %p100 = scmp.eq.s32.totalorder %s20, 1
      %p101 = scmp.ne.s32.totalorder %s96, %s98
      %p102 = scmp.eq.s32.totalorder %s20, 0
      %p103 = por %p101, %p102
      %p104 = scmp.ne.s32.totalorder %s96, %s98
      %p105 = scmp.eq.s32.totalorder %s25, 1
      %p106 = por %p104, %p105
      %p107 = scmp.ne.s32.totalorder %s98, %s99
      %p108 = scmp.eq.s32.totalorder %s25, 0
      %p109 = por %p107, %p108
      %p110 = scmp.ne.s32.totalorder %s98, %s99
      %p111 = scmp.eq.s32.totalorder %s26, 1
      %p112 = por %p110, %p111
      %p114 = scmp.ne.s32.totalorder %s99, %s113
      %p115 = scmp.eq.s32.totalorder %s26, 0
      %p116 = por %p114, %p115
      %s118 = sadd.s32 %s117, 1
      %p121 = scmp.eq.s32.totalorder %s20, 1
      %p122 = scmp.ne.s32.totalorder %s117, %s119
      %p123 = scmp.eq.s32.totalorder %s20, 0
      %p124 = por %p122, %p123
      %p125 = scmp.ne.s32.totalorder %s117, %s119
      %p126 = scmp.eq.s32.totalorder %s25, 1
      %p127 = por %p125, %p126
      %p128 = scmp.ne.s32.totalorder %s119, %s120
      %p129 = scmp.eq.s32.totalorder %s25, 0
      %p130 = por %p128, %p129
      %p131 = scmp.ne.s32.totalorder %s119, %s120
      %p132 = scmp.eq.s32.totalorder %s26, 1
      %p133 = por %p131, %p132
      %p135 = scmp.ne.s32.totalorder %s120, %s134
      %p136 = scmp.eq.s32.totalorder %s26, 0
      %p137 = por %p135, %p136
      %s139 = sadd.s32 %s138, 1
      %p142 = scmp.eq.s32.totalorder %s20, 1
      %p143 = scmp.ne.s32.totalorder %s138, %s140
      %p144 = scmp.eq.s32.totalorder %s20, 0
      %p145 = por %p143, %p144
      %p146 = scmp.ne.s32.totalorder %s138, %s140
      %p147 = scmp.eq.s32.totalorder %s25, 1
      %p148 = por %p146, %p147
      %p149 = scmp.ne.s32.totalorder %s140, %s141
      %p150 = scmp.eq.s32.totalorder %s25, 0
      %p151 = por %p149, %p150
      %p152 = scmp.ne.s32.totalorder %s140, %s141
      %p153 = scmp.eq.s32.totalorder %s26, 1
      %p154 = por %p152, %p153
      %p156 = scmp.ne.s32.totalorder %s141, %s155
      %p157 = scmp.eq.s32.totalorder %s26, 0
      %p158 = por %p156, %p157
      %s160 = sadd.s32 %s159, 1
      %p163 = scmp.eq.s32.totalorder %s20, 1
      %p164 = scmp.ne.s32.totalorder %s159, %s161
      %p165 = scmp.eq.s32.totalorder %s20, 0
      %p166 = por %p164, %p165
      %p167 = scmp.ne.s32.totalorder %s159, %s161
      %p168 = scmp.eq.s32.totalorder %s25, 1
      %p169 = por %p167, %p168
      %p170 = scmp.ne.s32.totalorder %s161, %s162
      %p171 = scmp.eq.s32.totalorder %s25, 0
      %p172 = por %p170, %p171
      %p173 = scmp.ne.s32.totalorder %s161, %s162
      %p174 = scmp.eq.s32.totalorder %s26, 1
      %p175 = por %p173, %p174
      %p177 = scmp.ne.s32.totalorder %s162, %s176
      %p178 = scmp.eq.s32.totalorder %s26, 0
      %p179 = por %p177, %p178
      %s180 = ssub.s32 %s20, %s27
      %p181 = scmp.eq.s32.totalorder %s180, 0
      %s183 = sadd.s32 %s182, 1
      %s184 = scalar_select %p181, %s182, %s183
      %p187 = pneg %p181
      %p188 = scmp.eq.s32.totalorder %s20, 1
      %p189 = por %p187, %p188
      %p190 = scmp.ne.s32.totalorder %s182, %s185
      %p191 = scmp.eq.s32.totalorder %s20, 0
      %p192 = por %p190, %p191
      %p193 = scmp.ne.s32.totalorder %s182, %s185
      %p194 = scmp.eq.s32.totalorder %s25, 1
      %p195 = por %p193, %p194
      %p196 = scmp.ne.s32.totalorder %s185, %s186
      %p197 = scmp.eq.s32.totalorder %s25, 0
      %p198 = por %p196, %p197
      %p199 = scmp.ne.s32.totalorder %s185, %s186
      %p200 = scmp.eq.s32.totalorder %s26, 1
      %p201 = por %p199, %p200
      %p203 = scmp.ne.s32.totalorder %s186, %s202
      %p204 = scmp.eq.s32.totalorder %s26, 0
      %p205 = por %p203, %p204
      %p206 = scmp.le.s32.totalorder 1, %s20
      %p207 = scmp.lt.s32.totalorder %s20, 3
      %p208 = pnand %p206, %p207
      %p209 = pneg %p208
      // Predicated region
      $region9: #{tpu_custom_call.1} parent=5 // pred_check
        _
      $region10: #{tpu_custom_call.1} parent=5 // pred_check_branch
        %211 = sbr.rel (%p208) target = $region12
      $region11: #{tpu_custom_call.1} parent=5 // pred_region
        %s212 = ssub.s32 %s20, 1
        // Predicated region
        $region13: #{tpu_custom_call.1} parent=11 // pred_check
          %p213 = pneg %p67
        $region14: #{tpu_custom_call.1} parent=11 // pred_check_branch
          %215 = sbr.rel (%p213) target = $region16
        $region15: #{tpu_custom_call.1} parent=11 // pred_region
          _
        $region16: #{tpu_custom_call.1} parent=11 // pred_fallthru
          _
        // Predicated region
        $region17: #{tpu_custom_call.1} parent=11 // pred_check
          %p216 = pneg %p88
        $region18: #{tpu_custom_call.1} parent=11 // pred_check_branch
          %218 = sbr.rel (%p216) target = $region20
        $region19: #{tpu_custom_call.1} parent=11 // pred_region
          _
        $region20: #{tpu_custom_call.1} parent=11 // pred_fallthru
          _
        // Predicated region
        $region21: #{tpu_custom_call.1} parent=11 // pred_check
          %p219 = pneg %p109
        $region22: #{tpu_custom_call.1} parent=11 // pred_check_branch
          %221 = sbr.rel (%p219) target = $region24
        $region23: #{tpu_custom_call.1} parent=11 // pred_region
          %s223 = ssub.s32 512, 512
          %224 = vsyncadd [#allocation6], %s223
          %s225 = sshll.u32 [#allocation5], 4
          %s226 = int_to_ptr.vmem [resolvable:$true] %s225
          %231 = dma.hbm_to_vmem [thread:$0]  %s3, 512, %s226, [#allocation6], 128, 128, 8
        $region24: #{tpu_custom_call.1} parent=11 // pred_fallthru
          _
        // Predicated region
        $region25: #{tpu_custom_call.1} parent=11 // pred_check
          %p232 = pneg %p130
        $region26: #{tpu_custom_call.1} parent=11 // pred_check_branch
          %234 = sbr.rel (%p232) target = $region28
        $region27: #{tpu_custom_call.1} parent=11 // pred_region
          _
        $region28: #{tpu_custom_call.1} parent=11 // pred_fallthru
          _
        // Predicated region
        $region29: #{tpu_custom_call.1} parent=11 // pred_check
          %p235 = pneg %p151
        $region30: #{tpu_custom_call.1} parent=11 // pred_check_branch
          %237 = sbr.rel (%p235) target = $region32
        $region31: #{tpu_custom_call.1} parent=11 // pred_region
          %s239 = ssub.s32 512, 512
          %240 = vsyncadd [#allocation6], %s239
          %s241 = sshll.u32 [#allocation7], 4
          %s242 = int_to_ptr.vmem [resolvable:$true] %s241
          %247 = dma.hbm_to_vmem [thread:$0]  %s5, 512, %s242, [#allocation6], 128, 128, 8
        $region32: #{tpu_custom_call.1} parent=11 // pred_fallthru
          _
        // Predicated region
        $region33: #{tpu_custom_call.1} parent=11 // pred_check
          %p248 = pneg %p172
        $region34: #{tpu_custom_call.1} parent=11 // pred_check_branch
          %250 = sbr.rel (%p248) target = $region36
        $region35: #{tpu_custom_call.1} parent=11 // pred_region
          _
        $region36: #{tpu_custom_call.1} parent=11 // pred_fallthru
          _
      $region12: #{tpu_custom_call.1} parent=5 // pred_fallthru
        _
      %p251 = scmp.lt.s32.totalorder %s20, 2
      // Predicated region
      $region37: #{tpu_custom_call.1} parent=5 // pred_check
        %p252 = pneg %p251
      $region38: #{tpu_custom_call.1} parent=5 // pred_check_branch
        %254 = sbr.rel (%p252) target = $region40
      $region39: #{tpu_custom_call.1} parent=5 // pred_region
        // Predicated region
        $region41: #{tpu_custom_call.1} parent=39 // pred_check
          %p255 = pneg %p40
        $region42: #{tpu_custom_call.1} parent=39 // pred_check_branch
          %257 = sbr.rel (%p255) target = $region44
        $region43: #{tpu_custom_call.1} parent=39 // pred_region
          %s258 = sand.u32 %s30, 1
          %s259 = scalar_lea.sflag [#allocation3], %s258
          %s260 = sand.u32 %s30, 1
          %s261 = smul.addr %s260, 16
          %s262 = scalar_lea.vmem [#allocation2], %s261
          %s264 = ssub.s32 256, 256
          %265 = vsyncadd %s259, %s264
          %s266 = smul.addr %s20, 2
          %s267 = smul.addr %s266, 128
          %s268 = scalar_lea.hbm %s0, %s267
          %s269 = sshll.u32 %s262, 4
          %s270 = int_to_ptr.vmem [resolvable:$true] %s269
          %275 = dma.hbm_to_vmem [thread:$0]  %s268, 256, %s270, %s259, 128, 128, 8
        $region44: #{tpu_custom_call.1} parent=39 // pred_fallthru
          _
      $region40: #{tpu_custom_call.1} parent=5 // pred_fallthru
        _
      %p276 = scmp.le.s32.totalorder 1, %s20
      %p277 = scmp.lt.s32.totalorder %s20, 3
      %p278 = pnand %p276, %p277
      %p279 = pneg %p278
      // Predicated region
      $region45: #{tpu_custom_call.1} parent=5 // pred_check
        _
      $region46: #{tpu_custom_call.1} parent=5 // pred_check_branch
        %281 = sbr.rel (%p278) target = $region48
      $region47: #{tpu_custom_call.1} parent=5 // pred_region
        %s282 = ssub.s32 %s20, 1
        %s283 = sand.u32 %s33, 1
        %s284 = scalar_lea.sflag [#allocation3], %s283
        %s285 = sand.u32 %s33, 1
        %s286 = smul.addr %s285, 16
        %s287 = scalar_lea.vmem [#allocation2], %s286
        // Predicated region
        $region49: #{tpu_custom_call.1} parent=47 // pred_check
          %p288 = pneg %p46
        $region50: #{tpu_custom_call.1} parent=47 // pred_check_branch
          %290 = sbr.rel (%p288) target = $region52
        $region51: #{tpu_custom_call.1} parent=47 // pred_region
          %291 = dma.done %s284, 256
        $region52: #{tpu_custom_call.1} parent=47 // pred_fallthru
          _
        // Predicated region
        $region53: #{tpu_custom_call.1} parent=47 // pred_check
          %p292 = pneg %p109
        $region54: #{tpu_custom_call.1} parent=47 // pred_check_branch
          %294 = sbr.rel (%p292) target = $region56
        $region55: #{tpu_custom_call.1} parent=47 // pred_region
          %295 = dma.done [#allocation6], 512
        $region56: #{tpu_custom_call.1} parent=47 // pred_fallthru
          _
        // Predicated region
        $region57: #{tpu_custom_call.1} parent=47 // pred_check
          %p296 = pneg %p151
        $region58: #{tpu_custom_call.1} parent=47 // pred_check_branch
          %298 = sbr.rel (%p296) target = $region60
        $region59: #{tpu_custom_call.1} parent=47 // pred_region
          %299 = dma.done [#allocation6], 512
        $region60: #{tpu_custom_call.1} parent=47 // pred_fallthru
          _
        %s300 = sand.u32 %s33, 1
        %s301 = scalar_lea.sflag [#allocation3], %s300
        %s302 = sand.u32 %s33, 1
        %s303 = smul.addr %s302, 16
        %s304 = scalar_lea.vmem [#allocation2], %s303
        %p305 = pneg %p46
        %p306 = pneg %p43
        %p307 = pneg %p67
        %p308 = pneg %p64
        %p309 = pneg %p88
        %p310 = pneg %p85
        %p311 = pneg %p109
        %p312 = pneg %p106
        %p313 = pneg %p130
        %p314 = pneg %p127
        %p315 = pneg %p151
        %p316 = pneg %p148
        %p317 = pneg %p172
        %p318 = pneg %p169
        %p319 = pneg %p198
        %p320 = pneg %p195
        %s321 = sand.u32 %s185, 1
        %s322 = scalar_lea.sflag [#allocation4], %s321
        %s323 = sand.u32 %s185, 1
        %s324 = smul.addr %s323, 16
        %s325 = scalar_lea.vmem [#allocation8], %s324
        %v326 = vld [vmem:[%s287] sm:$0xff]
        %v327 = vld [vmem:[%s287 + $0x8] sm:$0xff]
        %vm328 = vcmask 261120
        %v329 = vsel %vm328, %v326, 0.0
        %330 = vadd.xlane.f32.xlu0 %v329
        %v331 = vpop.xlane.xlu0 %330
        %v332 = vsel %vm328, %v327, 0.0
        %333 = vadd.xlane.f32.xlu0 %v332
        %v334 = vpop.xlane.xlu0 %333
        %v335 = vrcp.pop 32.0
        %v336 = vmul.f32 %v331, %v335
        %v337 = vmul.f32 %v334, %v335
        %v338 = vsub.f32 %v326, %v336
        %v339 = vsub.f32 %v327, %v337
        %v340 = vmul.f32 %v338, %v338
        %v341 = vmul.f32 %v339, %v339
        %v342 = vsel %vm328, %v340, 0.0
        %343 = vadd.xlane.f32.xlu0 %v342
        %v344 = vpop.xlane.xlu0 %343
        %v345 = vsel %vm328, %v341, 0.0
        %346 = vadd.xlane.f32.xlu0 %v345
        %v347 = vpop.xlane.xlu0 %346
        %v348 = vmul.f32 %v344, %v335
        %v349 = vmul.f32 %v347, %v335
        %v350 = vadd.f32 %v348, 1e-05
        %v351 = vadd.f32 %v349, 1e-05
        %v352 = vrsqrt.pop %v350
        %v353 = vrsqrt.pop %v351
        %v354 = vmul.f32 %v338, %v352
        %v355 = vmul.f32 %v339, %v353
        %v356 = vld [vmem:[%s1] sm:$0x1]
        %v358 = vlaneseq
        %v359 = vshrl.u32 %v358, 7
        %v360 = vsub.s32 0, %v359
        %v361 = vrot.slane %v356, %v360
        %v363 = vmul.f32 %v354, %v361
        %v364 = vmul.f32 %v355, %v361
        %v365 = vld [vmem:[%s2] sm:$0x1]
        %v367 = vlaneseq
        %v368 = vshrl.u32 %v367, 7
        %v369 = vsub.s32 0, %v368
        %v370 = vrot.slane %v365, %v369
        %v372 = vadd.f32 %v363, %v370
        %v373 = vadd.f32 %v364, %v370
        %v374 = vld [vmem:[#allocation5] sm:$0xff]
        %v375 = vld [vmem:[#allocation5 + $0x8] sm:$0xff]
        %v376 = vld [vmem:[#allocation5 + $0x10] sm:$0xff]
        %v377 = vld [vmem:[#allocation5 + $0x18] sm:$0xff]
        %v378 = vld [vmem:[%s4] sm:$0x1]
        %v380 = vlaneseq
        %v381 = vshrl.u32 %v380, 7
        %v382 = vsub.s32 0, %v381
        %v383 = vrot.slane %v378, %v382
        %v386 = vsel %vm328, %v372, 0
        %v389 = vsel %vm328, %v373, 0
        %391 = vmatprep.subr.mxu0 0.0
        %392 = vmatpush1.msra.mxu0 %v374
        %393 = vmatprep.subr.mxu0 0.0
        %394 = vmatpush1.msra.mxu0 %v375
        %395 = vmatprep.subr.mxu0 0.0
        %396 = vmatpush1.msra.mxu0 %v376
        %397 = vmatprep.subr.mxu0 0.0
        %398 = vmatpush1.msra.mxu0 %v377
        %399 = vmatprep.subr.mxu0 0.0
        %400 = vmatpush1.msra.mxu0 0.0
        %401 = vmatprep.subr.mxu0 0.0
        %402 = vmatpush1.msra.mxu0 0.0
        %403 = vmatprep.subr.mxu0 0.0
        %404 = vmatpush1.msra.mxu0 0.0
        %405 = vmatprep.subr.mxu0 0.0
        %406 = vmatpush1.msra.mxu0 0.0
        %407 = vmatprep.subr.mxu0 0.0
        %408 = vmatpush1.msra.mxu0 0.0
        %409 = vmatprep.subr.mxu0 0.0
        %410 = vmatpush1.msra.mxu0 0.0
        %411 = vmatprep.subr.mxu0 0.0
        %412 = vmatpush1.msra.mxu0 0.0
        %413 = vmatprep.subr.mxu0 0.0
        %414 = vmatpush1.msra.mxu0 0.0
        %415 = vmatprep.subr.mxu0 0.0
        %416 = vmatpush1.msra.mxu0 0.0
        %417 = vmatprep.subr.mxu0 0.0
        %418 = vmatpush1.msra.mxu0 0.0
        %419 = vmatprep.subr.mxu0 0.0
        %420 = vmatpush1.msra.mxu0 0.0
        %421 = vmatprep.subr.mxu0 0.0
        %422 = vmatpush1.msra.mxu0 0.0
        %423 = vmatprep.subr.mxu0 0.0
        %424 = vmatpush1.msra.mxu0 0.0
        %425 = vmatprep.subr.mxu0 0.0
        %426 = vmatpush1.msra.mxu0 0.0
        %427 = vmatprep.subr.mxu0 0.0
        %428 = vmatpush1.msra.mxu0 0.0
        %429 = vmatprep.subr.mxu0 0.0
        %430 = vmatpush1.msra.mxu0 0.0
        %431 = vmatprep.subr.mxu0 0.0
        %432 = vmatpush1.msra.mxu0 0.0
        %433 = vmatprep.subr.mxu0 0.0
        %434 = vmatpush1.msra.mxu0 0.0
        %435 = vmatprep.subr.mxu0 0.0
        %436 = vmatpush1.msra.mxu0 0.0
        %437 = vmatprep.subr.mxu0 0.0
        %438 = vmatpush1.msra.mxu0 0.0
        %439 = vmatprep.subr.mxu0 0.0
        %440 = vmatpush1.msra.mxu0 0.0
        %441 = vmatprep.subr.mxu0 0.0
        %442 = vmatpush1.msra.mxu0 0.0
        %443 = vmatprep.subr.mxu0 0.0
        %444 = vmatpush1.msra.mxu0 0.0
        %445 = vmatprep.subr.mxu0 0.0
        %446 = vmatpush1.msra.mxu0 0.0
        %447 = vmatprep.subr.mxu0 0.0
        %448 = vmatpush1.msra.mxu0 0.0
        %449 = vmatprep.subr.mxu0 0.0
        %450 = vmatpush1.msra.mxu0 0.0
        %451 = vmatprep.subr.mxu0 0.0
        %452 = vmatpush1.msra.mxu0 0.0
        %453 = vmatprep.subr.mxu0 0.0
        %454 = vmatpush1.msra.mxu0 0.0
        %455 = vmatprep.mubr.f32.mxu0 0.0
        %456 = vmatmul.mubr.f32.gmra.mrb[0].mxu0 %v386
        %v457 = vpop.f32.mrb[0].mxu0
        %v458 = vadd.f32 %v383, %v457
        %v459 = vpop.f32.mrb[0].mxu0
        %460 = vmatprep.mubr.f32.mxu0 0.0
        %461 = vmatmul.mubr.f32.gmra.mrb[0].mxu0 %v389
        %v462 = vpop.f32.mrb[0].mxu0
        %v463 = vadd.f32 %v383, %v462
        %v464 = vpop.f32.mrb[0].mxu0
        %465 = vdwg.mxu0
        %v466 = vlaneseq
        %v467 = vshrl.u32 %v466, 7
        %v468 = vadd.s32 %v467, 8
        %v469 = vlaneseq
        %v470 = vand.u32 %v469, 127
        %vm471 = vcmp.lt.s32.totalorder %v467, 11
        %vm472 = vcmp.lt.s32.totalorder %v468, 11
        %vm473 = vcmp.ge.s32.totalorder %v470, 11
        %vm474 = vmand %vm471, %vm473
        %vm475 = vmand %vm472, %vm473
        %vm476 = vcmp.ge.s32.totalorder %v467, 11
        %vm477 = vcmp.ge.s32.totalorder %v468, 11
        %vm478 = vcmp.lt.s32.totalorder %v467, 15
        %vm479 = vcmp.lt.s32.totalorder %v468, 15
        %vm480 = vmand %vm476, %vm478
        %vm481 = vmand %vm477, %vm479
        %vm482 = vcmp.ge.s32.totalorder %v470, %v467
        %vm483 = vcmp.ge.s32.totalorder %v470, %v468
        %vm484 = vmand %vm480, %vm482
        %vm485 = vmand %vm481, %vm483
        %vm486 = vmor %vm474, %vm484
        %vm487 = vmor %vm475, %vm485
        %v488 = vsel %vm486, -1e+09, 0.0
        %v489 = vsel %vm487, -1e+09, 0.0
        %492 = vrot.lane.b32.xlu0 %v458, 96
        %v493 = vpop.permute.xlu0 %492
        %494 = vrot.lane.b32.xlu0 %v463, 96
        %v495 = vpop.permute.xlu0 %494
        %vm496 = vcmask 64512
        %v497 = vsel %vm496, %v458, 0
        %v499 = vsel %vm496, %v463, 0
        %v501 = vsel %vm496, %v493, 0
        %v503 = vsel %vm496, %v495, 0
        %505 = vmatprep.subr.mxu0 0.0
        %506 = vmatpush1.xpose.msra.mxu0 %v501
        %507 = vmatprep.subr.mxu0 0.0
        %508 = vmatpush1.xpose.msra.mxu0 %v503
        %509 = vmatprep.subr.mxu0 0.0
        %510 = vmatpush1.xpose.msra.mxu0 0.0
        %511 = vmatprep.subr.mxu0 0.0
        %512 = vmatpush1.xpose.msra.mxu0 0.0
        %513 = vmatprep.subr.mxu0 0.0
        %514 = vmatpush1.xpose.msra.mxu0 0.0
        %515 = vmatprep.subr.mxu0 0.0
        %516 = vmatpush1.xpose.msra.mxu0 0.0
        %517 = vmatprep.subr.mxu0 0.0
        %518 = vmatpush1.xpose.msra.mxu0 0.0
        %519 = vmatprep.subr.mxu0 0.0
        %520 = vmatpush1.xpose.msra.mxu0 0.0
        %521 = vmatprep.subr.mxu0 0.0
        %522 = vmatpush1.xpose.msra.mxu0 0.0
        %523 = vmatprep.subr.mxu0 0.0
        %524 = vmatpush1.xpose.msra.mxu0 0.0
        %525 = vmatprep.subr.mxu0 0.0
        %526 = vmatpush1.xpose.msra.mxu0 0.0
        %527 = vmatprep.subr.mxu0 0.0
        %528 = vmatpush1.xpose.msra.mxu0 0.0
        %529 = vmatprep.subr.mxu0 0.0
        %530 = vmatpush1.xpose.msra.mxu0 0.0
        %531 = vmatprep.subr.mxu0 0.0
        %532 = vmatpush1.xpose.msra.mxu0 0.0
        %533 = vmatprep.subr.mxu0 0.0
        %534 = vmatpush1.xpose.msra.mxu0 0.0
        %535 = vmatprep.subr.mxu0 0.0
        %536 = vmatpush1.xpose.msra.mxu0 0.0
        %537 = vmatprep.subr.mxu0 0.0
        %538 = vmatpush1.xpose.msra.mxu0 0.0
        %539 = vmatprep.subr.mxu0 0.0
        %540 = vmatpush1.xpose.msra.mxu0 0.0
        %541 = vmatprep.subr.mxu0 0.0
        %542 = vmatpush1.xpose.msra.mxu0 0.0
        %543 = vmatprep.subr.mxu0 0.0
        %544 = vmatpush1.xpose.msra.mxu0 0.0
        %545 = vmatprep.subr.mxu0 0.0
        %546 = vmatpush1.xpose.msra.mxu0 0.0
        %547 = vmatprep.subr.mxu0 0.0
        %548 = vmatpush1.xpose.msra.mxu0 0.0
        %549 = vmatprep.subr.mxu0 0.0
        %550 = vmatpush1.xpose.msra.mxu0 0.0
        %551 = vmatprep.subr.mxu0 0.0
        %552 = vmatpush1.xpose.msra.mxu0 0.0
        %553 = vmatprep.subr.mxu0 0.0
        %554 = vmatpush1.xpose.msra.mxu0 0.0
        %555 = vmatprep.subr.mxu0 0.0
        %556 = vmatpush1.xpose.msra.mxu0 0.0
        %557 = vmatprep.subr.mxu0 0.0
        %558 = vmatpush1.xpose.msra.mxu0 0.0
        %559 = vmatprep.subr.mxu0 0.0
        %560 = vmatpush1.xpose.msra.mxu0 0.0
        %561 = vmatprep.subr.mxu0 0.0
        %562 = vmatpush1.xpose.msra.mxu0 0.0
        %563 = vmatprep.subr.mxu0 0.0
        %564 = vmatpush1.xpose.msra.mxu0 0.0
        %565 = vmatprep.subr.mxu0 0.0
        %566 = vmatpush1.xpose.msra.mxu0 0.0
        %567 = vmatprep.subr.mxu0 0.0
        %568 = vmatpush1.xpose.msra.mxu0 0.0
        %569 = vmatprep.mubr.f32.mxu0 0.0
        %570 = vmatmul.mubr.f32.gmra.mrb[0].mxu0 %v497
        %v571 = vpop.f32.mrb[0].mxu0
        %v572 = vadd.f32 0.0, %v571
        %v573 = vpop.f32.mrb[0].mxu0
        %574 = vmatprep.mubr.f32.mxu0 0.0
        %575 = vmatmul.mubr.f32.gmra.mrb[0].mxu0 %v499
        %v576 = vpop.f32.mrb[0].mxu0
        %v577 = vadd.f32 0.0, %v576
        %v578 = vpop.f32.mrb[0].mxu0
        %579 = vdwg.mxu0
        %v580 = vmul.f32 %v572, 0.35355338
        %v581 = vmul.f32 %v577, 0.35355338
        %v582 = vadd.f32 %v580, %v488
        %v583 = vadd.f32 %v581, %v489
        %vm584 = vcmask 130048
        %v585 = vsel %vm584, %v582, -inf
        %586 = vmax.xlane.f32.xlu0 %v585
        %v587 = vpop.xlane.xlu0 %586
        %v588 = vsel %vm584, %v583, -inf
        %589 = vmax.xlane.f32.xlu0 %v588
        %v590 = vpop.xlane.xlu0 %589
        %v591 = vsub.f32 %v582, %v587
        %v592 = vsub.f32 %v583, %v590
        %v593 = vmul.f32 %v591, 1.442695
        %v594 = vpow.pop %v593
        %v595 = vmul.f32 %v592, 1.442695
        %v596 = vpow.pop %v595
        %v597 = vsel %vm584, %v594, 0.0
        %598 = vadd.xlane.f32.xlu0 %v597
        %v599 = vpop.xlane.xlu0 %598
        %v600 = vsel %vm584, %v596, 0.0
        %601 = vadd.xlane.f32.xlu0 %v600
        %v602 = vpop.xlane.xlu0 %601
        %v603 = vrcp.pop %v599
        %v604 = vmul.f32 %v594, %v603
        %v605 = vrcp.pop %v602
        %v606 = vmul.f32 %v596, %v605
        %607 = vrot.lane.b32.xlu0 %v458, 64
        %v608 = vpop.permute.xlu0 %607
        %609 = vrot.lane.b32.xlu0 %v463, 64
        %v610 = vpop.permute.xlu0 %609
        %v614 = vsel %vm584, %v604, 0
        %v617 = vsel %vm584, %v606, 0
        %619 = vmatprep.subr.mxu0 0.0
        %620 = vmatpush1.msra.mxu0 %v608
        %621 = vmatprep.subr.mxu0 0.0
        %622 = vmatpush1.msra.mxu0 %v610
        %623 = vmatprep.subr.mxu0 0.0
        %624 = vmatpush1.msra.mxu0 0.0
        %625 = vmatprep.subr.mxu0 0.0
        %626 = vmatpush1.msra.mxu0 0.0
        %627 = vmatprep.subr.mxu0 0.0
        %628 = vmatpush1.msra.mxu0 0.0
        %629 = vmatprep.subr.mxu0 0.0
        %630 = vmatpush1.msra.mxu0 0.0
        %631 = vmatprep.subr.mxu0 0.0
        %632 = vmatpush1.msra.mxu0 0.0
        %633 = vmatprep.subr.mxu0 0.0
        %634 = vmatpush1.msra.mxu0 0.0
        %635 = vmatprep.subr.mxu0 0.0
        %636 = vmatpush1.msra.mxu0 0.0
        %637 = vmatprep.subr.mxu0 0.0
        %638 = vmatpush1.msra.mxu0 0.0
        %639 = vmatprep.subr.mxu0 0.0
        %640 = vmatpush1.msra.mxu0 0.0
        %641 = vmatprep.subr.mxu0 0.0
        %642 = vmatpush1.msra.mxu0 0.0
        %643 = vmatprep.subr.mxu0 0.0
        %644 = vmatpush1.msra.mxu0 0.0
        %645 = vmatprep.subr.mxu0 0.0
        %646 = vmatpush1.msra.mxu0 0.0
        %647 = vmatprep.subr.mxu0 0.0
        %648 = vmatpush1.msra.mxu0 0.0
        %649 = vmatprep.subr.mxu0 0.0
        %650 = vmatpush1.msra.mxu0 0.0
        %651 = vmatprep.subr.mxu0 0.0
        %652 = vmatpush1.msra.mxu0 0.0
        %653 = vmatprep.subr.mxu0 0.0
        %654 = vmatpush1.msra.mxu0 0.0
        %655 = vmatprep.subr.mxu0 0.0
        %656 = vmatpush1.msra.mxu0 0.0
        %657 = vmatprep.subr.mxu0 0.0
        %658 = vmatpush1.msra.mxu0 0.0
        %659 = vmatprep.subr.mxu0 0.0
        %660 = vmatpush1.msra.mxu0 0.0
        %661 = vmatprep.subr.mxu0 0.0
        %662 = vmatpush1.msra.mxu0 0.0
        %663 = vmatprep.subr.mxu0 0.0
        %664 = vmatpush1.msra.mxu0 0.0
        %665 = vmatprep.subr.mxu0 0.0
        %666 = vmatpush1.msra.mxu0 0.0
        %667 = vmatprep.subr.mxu0 0.0
        %668 = vmatpush1.msra.mxu0 0.0
        %669 = vmatprep.subr.mxu0 0.0
        %670 = vmatpush1.msra.mxu0 0.0
        %671 = vmatprep.subr.mxu0 0.0
        %672 = vmatpush1.msra.mxu0 0.0
        %673 = vmatprep.subr.mxu0 0.0
        %674 = vmatpush1.msra.mxu0 0.0
        %675 = vmatprep.subr.mxu0 0.0
        %676 = vmatpush1.msra.mxu0 0.0
        %677 = vmatprep.subr.mxu0 0.0
        %678 = vmatpush1.msra.mxu0 0.0
        %679 = vmatprep.subr.mxu0 0.0
        %680 = vmatpush1.msra.mxu0 0.0
        %681 = vmatprep.subr.mxu0 0.0
        %682 = vmatpush1.msra.mxu0 0.0
        %683 = vmatprep.mubr.f32.mxu0 0.0
        %684 = vmatmul.mubr.f32.gmra.mrb[0].mxu0 %v614
        %v685 = vpop.f32.mrb[0].mxu0
        %v686 = vadd.f32 0.0, %v685
        %v687 = vpop.f32.mrb[0].mxu0
        %688 = vmatprep.mubr.f32.mxu0 0.0
        %689 = vmatmul.mubr.f32.gmra.mrb[0].mxu0 %v617
        %v690 = vpop.f32.mrb[0].mxu0
        %v691 = vadd.f32 0.0, %v690
        %v692 = vpop.f32.mrb[0].mxu0
        %693 = vdwg.mxu0
        %694 = vrot.lane.b32.xlu0 %v458, 120
        %v695 = vpop.permute.xlu0 %694
        %696 = vrot.lane.b32.xlu0 %v463, 120
        %v697 = vpop.permute.xlu0 %696
        %698 = vrot.lane.b32.xlu0 %v458, 88
        %v699 = vpop.permute.xlu0 %698
        %700 = vrot.lane.b32.xlu0 %v463, 88
        %v701 = vpop.permute.xlu0 %700
        %v702 = vsel %vm496, %v695, 0
        %v704 = vsel %vm496, %v697, 0
        %v706 = vsel %vm496, %v699, 0
        %v708 = vsel %vm496, %v701, 0
        %710 = vmatprep.subr.mxu0 0.0
        %711 = vmatpush1.xpose.msra.mxu0 %v706
        %712 = vmatprep.subr.mxu0 0.0
        %713 = vmatpush1.xpose.msra.mxu0 %v708
        %714 = vmatprep.subr.mxu0 0.0
        %715 = vmatpush1.xpose.msra.mxu0 0.0
        %716 = vmatprep.subr.mxu0 0.0
        %717 = vmatpush1.xpose.msra.mxu0 0.0
        %718 = vmatprep.subr.mxu0 0.0
        %719 = vmatpush1.xpose.msra.mxu0 0.0
        %720 = vmatprep.subr.mxu0 0.0
        %721 = vmatpush1.xpose.msra.mxu0 0.0
        %722 = vmatprep.subr.mxu0 0.0
        %723 = vmatpush1.xpose.msra.mxu0 0.0
        %724 = vmatprep.subr.mxu0 0.0
        %725 = vmatpush1.xpose.msra.mxu0 0.0
        %726 = vmatprep.subr.mxu0 0.0
        %727 = vmatpush1.xpose.msra.mxu0 0.0
        %728 = vmatprep.subr.mxu0 0.0
        %729 = vmatpush1.xpose.msra.mxu0 0.0
        %730 = vmatprep.subr.mxu0 0.0
        %731 = vmatpush1.xpose.msra.mxu0 0.0
        %732 = vmatprep.subr.mxu0 0.0
        %733 = vmatpush1.xpose.msra.mxu0 0.0
        %734 = vmatprep.subr.mxu0 0.0
        %735 = vmatpush1.xpose.msra.mxu0 0.0
        %736 = vmatprep.subr.mxu0 0.0
        %737 = vmatpush1.xpose.msra.mxu0 0.0
        %738 = vmatprep.subr.mxu0 0.0
        %739 = vmatpush1.xpose.msra.mxu0 0.0
        %740 = vmatprep.subr.mxu0 0.0
        %741 = vmatpush1.xpose.msra.mxu0 0.0
        %742 = vmatprep.subr.mxu0 0.0
        %743 = vmatpush1.xpose.msra.mxu0 0.0
        %744 = vmatprep.subr.mxu0 0.0
        %745 = vmatpush1.xpose.msra.mxu0 0.0
        %746 = vmatprep.subr.mxu0 0.0
        %747 = vmatpush1.xpose.msra.mxu0 0.0
        %748 = vmatprep.subr.mxu0 0.0
        %749 = vmatpush1.xpose.msra.mxu0 0.0
        %750 = vmatprep.subr.mxu0 0.0
        %751 = vmatpush1.xpose.msra.mxu0 0.0
        %752 = vmatprep.subr.mxu0 0.0
        %753 = vmatpush1.xpose.msra.mxu0 0.0
        %754 = vmatprep.subr.mxu0 0.0
        %755 = vmatpush1.xpose.msra.mxu0 0.0
        %756 = vmatprep.subr.mxu0 0.0
        %757 = vmatpush1.xpose.msra.mxu0 0.0
        %758 = vmatprep.subr.mxu0 0.0
        %759 = vmatpush1.xpose.msra.mxu0 0.0
        %760 = vmatprep.subr.mxu0 0.0
        %761 = vmatpush1.xpose.msra.mxu0 0.0
        %762 = vmatprep.subr.mxu0 0.0
        %763 = vmatpush1.xpose.msra.mxu0 0.0
        %764 = vmatprep.subr.mxu0 0.0
        %765 = vmatpush1.xpose.msra.mxu0 0.0
        %766 = vmatprep.subr.mxu0 0.0
        %767 = vmatpush1.xpose.msra.mxu0 0.0
        %768 = vmatprep.subr.mxu0 0.0
        %769 = vmatpush1.xpose.msra.mxu0 0.0
        %770 = vmatprep.subr.mxu0 0.0
        %771 = vmatpush1.xpose.msra.mxu0 0.0
        %772 = vmatprep.subr.mxu0 0.0
        %773 = vmatpush1.xpose.msra.mxu0 0.0
        %774 = vmatprep.mubr.f32.mxu0 0.0
        %775 = vmatmul.mubr.f32.gmra.mrb[0].mxu0 %v702
        %v776 = vpop.f32.mrb[0].mxu0
        %v777 = vadd.f32 0.0, %v776
        %v778 = vpop.f32.mrb[0].mxu0
        %779 = vmatprep.mubr.f32.mxu0 0.0
        %780 = vmatmul.mubr.f32.gmra.mrb[0].mxu0 %v704
        %v781 = vpop.f32.mrb[0].mxu0
        %v782 = vadd.f32 0.0, %v781
        %v783 = vpop.f32.mrb[0].mxu0
        %784 = vdwg.mxu0
        %v785 = vmul.f32 %v777, 0.35355338
        %v786 = vmul.f32 %v782, 0.35355338
        %v787 = vadd.f32 %v785, %v488
        %v788 = vadd.f32 %v786, %v489
        %v789 = vsel %vm584, %v787, -inf
        %790 = vmax.xlane.f32.xlu0 %v789
        %v791 = vpop.xlane.xlu0 %790
        %v792 = vsel %vm584, %v788, -inf
        %793 = vmax.xlane.f32.xlu0 %v792
        %v794 = vpop.xlane.xlu0 %793
        %v795 = vsub.f32 %v787, %v791
        %v796 = vsub.f32 %v788, %v794
        %v797 = vmul.f32 %v795, 1.442695
        %v798 = vpow.pop %v797
        %v799 = vmul.f32 %v796, 1.442695
        %v800 = vpow.pop %v799
        %v801 = vsel %vm584, %v798, 0.0
        %802 = vadd.xlane.f32.xlu0 %v801
        %v803 = vpop.xlane.xlu0 %802
        %v804 = vsel %vm584, %v800, 0.0
        %805 = vadd.xlane.f32.xlu0 %v804
        %v806 = vpop.xlane.xlu0 %805
        %v807 = vrcp.pop %v803
        %v808 = vmul.f32 %v798, %v807
        %v809 = vrcp.pop %v806
        %v810 = vmul.f32 %v800, %v809
        %811 = vrot.lane.b32.xlu0 %v458, 56
        %v812 = vpop.permute.xlu0 %811
        %813 = vrot.lane.b32.xlu0 %v463, 56
        %v814 = vpop.permute.xlu0 %813
        %v818 = vsel %vm584, %v808, 0
        %v821 = vsel %vm584, %v810, 0
        %823 = vmatprep.subr.mxu0 0.0
        %824 = vmatpush1.msra.mxu0 %v812
        %825 = vmatprep.subr.mxu0 0.0
        %826 = vmatpush1.msra.mxu0 %v814
        %827 = vmatprep.subr.mxu0 0.0
        %828 = vmatpush1.msra.mxu0 0.0
        %829 = vmatprep.subr.mxu0 0.0
        %830 = vmatpush1.msra.mxu0 0.0
        %831 = vmatprep.subr.mxu0 0.0
        %832 = vmatpush1.msra.mxu0 0.0
        %833 = vmatprep.subr.mxu0 0.0
        %834 = vmatpush1.msra.mxu0 0.0
        %835 = vmatprep.subr.mxu0 0.0
        %836 = vmatpush1.msra.mxu0 0.0
        %837 = vmatprep.subr.mxu0 0.0
        %838 = vmatpush1.msra.mxu0 0.0
        %839 = vmatprep.subr.mxu0 0.0
        %840 = vmatpush1.msra.mxu0 0.0
        %841 = vmatprep.subr.mxu0 0.0
        %842 = vmatpush1.msra.mxu0 0.0
        %843 = vmatprep.subr.mxu0 0.0
        %844 = vmatpush1.msra.mxu0 0.0
        %845 = vmatprep.subr.mxu0 0.0
        %846 = vmatpush1.msra.mxu0 0.0
        %847 = vmatprep.subr.mxu0 0.0
        %848 = vmatpush1.msra.mxu0 0.0
        %849 = vmatprep.subr.mxu0 0.0
        %850 = vmatpush1.msra.mxu0 0.0
        %851 = vmatprep.subr.mxu0 0.0
        %852 = vmatpush1.msra.mxu0 0.0
        %853 = vmatprep.subr.mxu0 0.0
        %854 = vmatpush1.msra.mxu0 0.0
        %855 = vmatprep.subr.mxu0 0.0
        %856 = vmatpush1.msra.mxu0 0.0
        %857 = vmatprep.subr.mxu0 0.0
        %858 = vmatpush1.msra.mxu0 0.0
        %859 = vmatprep.subr.mxu0 0.0
        %860 = vmatpush1.msra.mxu0 0.0
        %861 = vmatprep.subr.mxu0 0.0
        %862 = vmatpush1.msra.mxu0 0.0
        %863 = vmatprep.subr.mxu0 0.0
        %864 = vmatpush1.msra.mxu0 0.0
        %865 = vmatprep.subr.mxu0 0.0
        %866 = vmatpush1.msra.mxu0 0.0
        %867 = vmatprep.subr.mxu0 0.0
        %868 = vmatpush1.msra.mxu0 0.0
        %869 = vmatprep.subr.mxu0 0.0
        %870 = vmatpush1.msra.mxu0 0.0
        %871 = vmatprep.subr.mxu0 0.0
        %872 = vmatpush1.msra.mxu0 0.0
        %873 = vmatprep.subr.mxu0 0.0
        %874 = vmatpush1.msra.mxu0 0.0
        %875 = vmatprep.subr.mxu0 0.0
        %876 = vmatpush1.msra.mxu0 0.0
        %877 = vmatprep.subr.mxu0 0.0
        %878 = vmatpush1.msra.mxu0 0.0
        %879 = vmatprep.subr.mxu0 0.0
        %880 = vmatpush1.msra.mxu0 0.0
        %881 = vmatprep.subr.mxu0 0.0
        %882 = vmatpush1.msra.mxu0 0.0
        %883 = vmatprep.subr.mxu0 0.0
        %884 = vmatpush1.msra.mxu0 0.0
        %885 = vmatprep.subr.mxu0 0.0
        %886 = vmatpush1.msra.mxu0 0.0
        %887 = vmatprep.mubr.f32.mxu0 0.0
        %888 = vmatmul.mubr.f32.gmra.mrb[0].mxu0 %v818
        %v889 = vpop.f32.mrb[0].mxu0
        %v890 = vadd.f32 0.0, %v889
        %v891 = vpop.f32.mrb[0].mxu0
        %892 = vmatprep.mubr.f32.mxu0 0.0
        %893 = vmatmul.mubr.f32.gmra.mrb[0].mxu0 %v821
        %v894 = vpop.f32.mrb[0].mxu0
        %v895 = vadd.f32 0.0, %v894
        %v896 = vpop.f32.mrb[0].mxu0
        %897 = vdwg.mxu0
        %898 = vrot.lane.b32.xlu0 %v458, 112
        %v899 = vpop.permute.xlu0 %898
        %900 = vrot.lane.b32.xlu0 %v463, 112
        %v901 = vpop.permute.xlu0 %900
        %902 = vrot.lane.b32.xlu0 %v458, 80
        %v903 = vpop.permute.xlu0 %902
        %904 = vrot.lane.b32.xlu0 %v463, 80
        %v905 = vpop.permute.xlu0 %904
        %v906 = vsel %vm496, %v899, 0
        %v908 = vsel %vm496, %v901, 0
        %v910 = vsel %vm496, %v903, 0
        %v912 = vsel %vm496, %v905, 0
        %914 = vmatprep.subr.mxu0 0.0
        %915 = vmatpush1.xpose.msra.mxu0 %v910
        %916 = vmatprep.subr.mxu0 0.0
        %917 = vmatpush1.xpose.msra.mxu0 %v912
        %918 = vmatprep.subr.mxu0 0.0
        %919 = vmatpush1.xpose.msra.mxu0 0.0
        %920 = vmatprep.subr.mxu0 0.0
        %921 = vmatpush1.xpose.msra.mxu0 0.0
        %922 = vmatprep.subr.mxu0 0.0
        %923 = vmatpush1.xpose.msra.mxu0 0.0
        %924 = vmatprep.subr.mxu0 0.0
        %925 = vmatpush1.xpose.msra.mxu0 0.0
        %926 = vmatprep.subr.mxu0 0.0
        %927 = vmatpush1.xpose.msra.mxu0 0.0
        %928 = vmatprep.subr.mxu0 0.0
        %929 = vmatpush1.xpose.msra.mxu0 0.0
        %930 = vmatprep.subr.mxu0 0.0
        %931 = vmatpush1.xpose.msra.mxu0 0.0
        %932 = vmatprep.subr.mxu0 0.0
        %933 = vmatpush1.xpose.msra.mxu0 0.0
        %934 = vmatprep.subr.mxu0 0.0
        %935 = vmatpush1.xpose.msra.mxu0 0.0
        %936 = vmatprep.subr.mxu0 0.0
        %937 = vmatpush1.xpose.msra.mxu0 0.0
        %938 = vmatprep.subr.mxu0 0.0
        %939 = vmatpush1.xpose.msra.mxu0 0.0
        %940 = vmatprep.subr.mxu0 0.0
        %941 = vmatpush1.xpose.msra.mxu0 0.0
        %942 = vmatprep.subr.mxu0 0.0
        %943 = vmatpush1.xpose.msra.mxu0 0.0
        %944 = vmatprep.subr.mxu0 0.0
        %945 = vmatpush1.xpose.msra.mxu0 0.0
        %946 = vmatprep.subr.mxu0 0.0
        %947 = vmatpush1.xpose.msra.mxu0 0.0
        %948 = vmatprep.subr.mxu0 0.0
        %949 = vmatpush1.xpose.msra.mxu0 0.0
        %950 = vmatprep.subr.mxu0 0.0
        %951 = vmatpush1.xpose.msra.mxu0 0.0
        %952 = vmatprep.subr.mxu0 0.0
        %953 = vmatpush1.xpose.msra.mxu0 0.0
        %954 = vmatprep.subr.mxu0 0.0
        %955 = vmatpush1.xpose.msra.mxu0 0.0
        %956 = vmatprep.subr.mxu0 0.0
        %957 = vmatpush1.xpose.msra.mxu0 0.0
        %958 = vmatprep.subr.mxu0 0.0
        %959 = vmatpush1.xpose.msra.mxu0 0.0
        %960 = vmatprep.subr.mxu0 0.0
        %961 = vmatpush1.xpose.msra.mxu0 0.0
        %962 = vmatprep.subr.mxu0 0.0
        %963 = vmatpush1.xpose.msra.mxu0 0.0
        %964 = vmatprep.subr.mxu0 0.0
        %965 = vmatpush1.xpose.msra.mxu0 0.0
        %966 = vmatprep.subr.mxu0 0.0
        %967 = vmatpush1.xpose.msra.mxu0 0.0
        %968 = vmatprep.subr.mxu0 0.0
        %969 = vmatpush1.xpose.msra.mxu0 0.0
        %970 = vmatprep.subr.mxu0 0.0
        %971 = vmatpush1.xpose.msra.mxu0 0.0
        %972 = vmatprep.subr.mxu0 0.0
        %973 = vmatpush1.xpose.msra.mxu0 0.0
        %974 = vmatprep.subr.mxu0 0.0
        %975 = vmatpush1.xpose.msra.mxu0 0.0
        %976 = vmatprep.subr.mxu0 0.0
        %977 = vmatpush1.xpose.msra.mxu0 0.0
        %978 = vmatprep.mubr.f32.mxu0 0.0
        %979 = vmatmul.mubr.f32.gmra.mrb[0].mxu0 %v906
        %v980 = vpop.f32.mrb[0].mxu0
        %v981 = vadd.f32 0.0, %v980
        %v982 = vpop.f32.mrb[0].mxu0
        %983 = vmatprep.mubr.f32.mxu0 0.0
        %984 = vmatmul.mubr.f32.gmra.mrb[0].mxu0 %v908
        %v985 = vpop.f32.mrb[0].mxu0
        %v986 = vadd.f32 0.0, %v985
        %v987 = vpop.f32.mrb[0].mxu0
        %988 = vdwg.mxu0
        %v989 = vmul.f32 %v981, 0.35355338
        %v990 = vmul.f32 %v986, 0.35355338
        %v991 = vadd.f32 %v989, %v488
        %v992 = vadd.f32 %v990, %v489
        %v993 = vsel %vm584, %v991, -inf
        %994 = vmax.xlane.f32.xlu0 %v993
        %v995 = vpop.xlane.xlu0 %994
        %v996 = vsel %vm584, %v992, -inf
        %997 = vmax.xlane.f32.xlu0 %v996
        %v998 = vpop.xlane.xlu0 %997
        %v999 = vsub.f32 %v991, %v995
        %v1000 = vsub.f32 %v992, %v998
        %v1001 = vmul.f32 %v999, 1.442695
        %v1002 = vpow.pop %v1001
        %v1003 = vmul.f32 %v1000, 1.442695
        %v1004 = vpow.pop %v1003
        %v1005 = vsel %vm584, %v1002, 0.0
        %1006 = vadd.xlane.f32.xlu0 %v1005
        %v1007 = vpop.xlane.xlu0 %1006
        %v1008 = vsel %vm584, %v1004, 0.0
        %1009 = vadd.xlane.f32.xlu0 %v1008
        %v1010 = vpop.xlane.xlu0 %1009
        %v1011 = vrcp.pop %v1007
        %v1012 = vmul.f32 %v1002, %v1011
        %v1013 = vrcp.pop %v1010
        %v1014 = vmul.f32 %v1004, %v1013
        %1015 = vrot.lane.b32.xlu0 %v458, 48
        %v1016 = vpop.permute.xlu0 %1015
        %1017 = vrot.lane.b32.xlu0 %v463, 48
        %v1018 = vpop.permute.xlu0 %1017
        %v1022 = vsel %vm584, %v1012, 0
        %v1025 = vsel %vm584, %v1014, 0
        %1027 = vmatprep.subr.mxu0 0.0
        %1028 = vmatpush1.msra.mxu0 %v1016
        %1029 = vmatprep.subr.mxu0 0.0
        %1030 = vmatpush1.msra.mxu0 %v1018
        %1031 = vmatprep.subr.mxu0 0.0
        %1032 = vmatpush1.msra.mxu0 0.0
        %1033 = vmatprep.subr.mxu0 0.0
        %1034 = vmatpush1.msra.mxu0 0.0
        %1035 = vmatprep.subr.mxu0 0.0
        %1036 = vmatpush1.msra.mxu0 0.0
        %1037 = vmatprep.subr.mxu0 0.0
        %1038 = vmatpush1.msra.mxu0 0.0
        %1039 = vmatprep.subr.mxu0 0.0
        %1040 = vmatpush1.msra.mxu0 0.0
        %1041 = vmatprep.subr.mxu0 0.0
        %1042 = vmatpush1.msra.mxu0 0.0
        %1043 = vmatprep.subr.mxu0 0.0
        %1044 = vmatpush1.msra.mxu0 0.0
        %1045 = vmatprep.subr.mxu0 0.0
        %1046 = vmatpush1.msra.mxu0 0.0
        %1047 = vmatprep.subr.mxu0 0.0
        %1048 = vmatpush1.msra.mxu0 0.0
        %1049 = vmatprep.subr.mxu0 0.0
        %1050 = vmatpush1.msra.mxu0 0.0
        %1051 = vmatprep.subr.mxu0 0.0
        %1052 = vmatpush1.msra.mxu0 0.0
        %1053 = vmatprep.subr.mxu0 0.0
        %1054 = vmatpush1.msra.mxu0 0.0
        %1055 = vmatprep.subr.mxu0 0.0
        %1056 = vmatpush1.msra.mxu0 0.0
        %1057 = vmatprep.subr.mxu0 0.0
        %1058 = vmatpush1.msra.mxu0 0.0
        %1059 = vmatprep.subr.mxu0 0.0
        %1060 = vmatpush1.msra.mxu0 0.0
        %1061 = vmatprep.subr.mxu0 0.0
        %1062 = vmatpush1.msra.mxu0 0.0
        %1063 = vmatprep.subr.mxu0 0.0
        %1064 = vmatpush1.msra.mxu0 0.0
        %1065 = vmatprep.subr.mxu0 0.0
        %1066 = vmatpush1.msra.mxu0 0.0
        %1067 = vmatprep.subr.mxu0 0.0
        %1068 = vmatpush1.msra.mxu0 0.0
        %1069 = vmatprep.subr.mxu0 0.0
        %1070 = vmatpush1.msra.mxu0 0.0
        %1071 = vmatprep.subr.mxu0 0.0
        %1072 = vmatpush1.msra.mxu0 0.0
        %1073 = vmatprep.subr.mxu0 0.0
        %1074 = vmatpush1.msra.mxu0 0.0
        %1075 = vmatprep.subr.mxu0 0.0
        %1076 = vmatpush1.msra.mxu0 0.0
        %1077 = vmatprep.subr.mxu0 0.0
        %1078 = vmatpush1.msra.mxu0 0.0
        %1079 = vmatprep.subr.mxu0 0.0
        %1080 = vmatpush1.msra.mxu0 0.0
        %1081 = vmatprep.subr.mxu0 0.0
        %1082 = vmatpush1.msra.mxu0 0.0
        %1083 = vmatprep.subr.mxu0 0.0
        %1084 = vmatpush1.msra.mxu0 0.0
        %1085 = vmatprep.subr.mxu0 0.0
        %1086 = vmatpush1.msra.mxu0 0.0
        %1087 = vmatprep.subr.mxu0 0.0
        %1088 = vmatpush1.msra.mxu0 0.0
        %1089 = vmatprep.subr.mxu0 0.0
        %1090 = vmatpush1.msra.mxu0 0.0
        %1091 = vmatprep.mubr.f32.mxu0 0.0
        %1092 = vmatmul.mubr.f32.gmra.mrb[0].mxu0 %v1022
        %v1093 = vpop.f32.mrb[0].mxu0
        %v1094 = vadd.f32 0.0, %v1093
        %v1095 = vpop.f32.mrb[0].mxu0
        %1096 = vmatprep.mubr.f32.mxu0 0.0
        %1097 = vmatmul.mubr.f32.gmra.mrb[0].mxu0 %v1025
        %v1098 = vpop.f32.mrb[0].mxu0
        %v1099 = vadd.f32 0.0, %v1098
        %v1100 = vpop.f32.mrb[0].mxu0
        %1101 = vdwg.mxu0
        %1102 = vrot.lane.b32.xlu0 %v458, 104
        %v1103 = vpop.permute.xlu0 %1102
        %1104 = vrot.lane.b32.xlu0 %v463, 104
        %v1105 = vpop.permute.xlu0 %1104
        %1106 = vrot.lane.b32.xlu0 %v458, 72
        %v1107 = vpop.permute.xlu0 %1106
        %1108 = vrot.lane.b32.xlu0 %v463, 72
        %v1109 = vpop.permute.xlu0 %1108
        %v1110 = vsel %vm496, %v1103, 0
        %v1112 = vsel %vm496, %v1105, 0
        %v1114 = vsel %vm496, %v1107, 0
        %v1116 = vsel %vm496, %v1109, 0
        %1118 = vmatprep.subr.mxu0 0.0
        %1119 = vmatpush1.xpose.msra.mxu0 %v1114
        %1120 = vmatprep.subr.mxu0 0.0
        %1121 = vmatpush1.xpose.msra.mxu0 %v1116
        %1122 = vmatprep.subr.mxu0 0.0
        %1123 = vmatpush1.xpose.msra.mxu0 0.0
        %1124 = vmatprep.subr.mxu0 0.0
        %1125 = vmatpush1.xpose.msra.mxu0 0.0
        %1126 = vmatprep.subr.mxu0 0.0
        %1127 = vmatpush1.xpose.msra.mxu0 0.0
        %1128 = vmatprep.subr.mxu0 0.0
        %1129 = vmatpush1.xpose.msra.mxu0 0.0
        %1130 = vmatprep.subr.mxu0 0.0
        %1131 = vmatpush1.xpose.msra.mxu0 0.0
        %1132 = vmatprep.subr.mxu0 0.0
        %1133 = vmatpush1.xpose.msra.mxu0 0.0
        %1134 = vmatprep.subr.mxu0 0.0
        %1135 = vmatpush1.xpose.msra.mxu0 0.0
        %1136 = vmatprep.subr.mxu0 0.0
        %1137 = vmatpush1.xpose.msra.mxu0 0.0
        %1138 = vmatprep.subr.mxu0 0.0
        %1139 = vmatpush1.xpose.msra.mxu0 0.0
        %1140 = vmatprep.subr.mxu0 0.0
        %1141 = vmatpush1.xpose.msra.mxu0 0.0
        %1142 = vmatprep.subr.mxu0 0.0
        %1143 = vmatpush1.xpose.msra.mxu0 0.0
        %1144 = vmatprep.subr.mxu0 0.0
        %1145 = vmatpush1.xpose.msra.mxu0 0.0
        %1146 = vmatprep.subr.mxu0 0.0
        %1147 = vmatpush1.xpose.msra.mxu0 0.0
        %1148 = vmatprep.subr.mxu0 0.0
        %1149 = vmatpush1.xpose.msra.mxu0 0.0
        %1150 = vmatprep.subr.mxu0 0.0
        %1151 = vmatpush1.xpose.msra.mxu0 0.0
        %1152 = vmatprep.subr.mxu0 0.0
        %1153 = vmatpush1.xpose.msra.mxu0 0.0
        %1154 = vmatprep.subr.mxu0 0.0
        %1155 = vmatpush1.xpose.msra.mxu0 0.0
        %1156 = vmatprep.subr.mxu0 0.0
        %1157 = vmatpush1.xpose.msra.mxu0 0.0
        %1158 = vmatprep.subr.mxu0 0.0
        %1159 = vmatpush1.xpose.msra.mxu0 0.0
        %1160 = vmatprep.subr.mxu0 0.0
        %1161 = vmatpush1.xpose.msra.mxu0 0.0
        %1162 = vmatprep.subr.mxu0 0.0
        %1163 = vmatpush1.xpose.msra.mxu0 0.0
        %1164 = vmatprep.subr.mxu0 0.0
        %1165 = vmatpush1.xpose.msra.mxu0 0.0
        %1166 = vmatprep.subr.mxu0 0.0
        %1167 = vmatpush1.xpose.msra.mxu0 0.0
        %1168 = vmatprep.subr.mxu0 0.0
        %1169 = vmatpush1.xpose.msra.mxu0 0.0
        %1170 = vmatprep.subr.mxu0 0.0
        %1171 = vmatpush1.xpose.msra.mxu0 0.0
        %1172 = vmatprep.subr.mxu0 0.0
        %1173 = vmatpush1.xpose.msra.mxu0 0.0
        %1174 = vmatprep.subr.mxu0 0.0
        %1175 = vmatpush1.xpose.msra.mxu0 0.0
        %1176 = vmatprep.subr.mxu0 0.0
        %1177 = vmatpush1.xpose.msra.mxu0 0.0
        %1178 = vmatprep.subr.mxu0 0.0
        %1179 = vmatpush1.xpose.msra.mxu0 0.0
        %1180 = vmatprep.subr.mxu0 0.0
        %1181 = vmatpush1.xpose.msra.mxu0 0.0
        %1182 = vmatprep.mubr.f32.mxu0 0.0
        %1183 = vmatmul.mubr.f32.gmra.mrb[0].mxu0 %v1110
        %v1184 = vpop.f32.mrb[0].mxu0
        %v1185 = vadd.f32 0.0, %v1184
        %v1186 = vpop.f32.mrb[0].mxu0
        %1187 = vmatprep.mubr.f32.mxu0 0.0
        %1188 = vmatmul.mubr.f32.gmra.mrb[0].mxu0 %v1112
        %v1189 = vpop.f32.mrb[0].mxu0
        %v1190 = vadd.f32 0.0, %v1189
        %v1191 = vpop.f32.mrb[0].mxu0
        %1192 = vdwg.mxu0
        %v1193 = vmul.f32 %v1185, 0.35355338
        %v1194 = vmul.f32 %v1190, 0.35355338
        %v1195 = vadd.f32 %v1193, %v488
        %v1196 = vadd.f32 %v1194, %v489
        %v1197 = vsel %vm584, %v1195, -inf
        %1198 = vmax.xlane.f32.xlu0 %v1197
        %v1199 = vpop.xlane.xlu0 %1198
        %v1200 = vsel %vm584, %v1196, -inf
        %1201 = vmax.xlane.f32.xlu0 %v1200
        %v1202 = vpop.xlane.xlu0 %1201
        %v1203 = vsub.f32 %v1195, %v1199
        %v1204 = vsub.f32 %v1196, %v1202
        %v1205 = vmul.f32 %v1203, 1.442695
        %v1206 = vpow.pop %v1205
        %v1207 = vmul.f32 %v1204, 1.442695
        %v1208 = vpow.pop %v1207
        %v1209 = vsel %vm584, %v1206, 0.0
        %1210 = vadd.xlane.f32.xlu0 %v1209
        %v1211 = vpop.xlane.xlu0 %1210
        %v1212 = vsel %vm584, %v1208, 0.0
        %1213 = vadd.xlane.f32.xlu0 %v1212
        %v1214 = vpop.xlane.xlu0 %1213
        %v1215 = vrcp.pop %v1211
        %v1216 = vmul.f32 %v1206, %v1215
        %v1217 = vrcp.pop %v1214
        %v1218 = vmul.f32 %v1208, %v1217
        %1219 = vrot.lane.b32.xlu0 %v458, 40
        %v1220 = vpop.permute.xlu0 %1219
        %1221 = vrot.lane.b32.xlu0 %v463, 40
        %v1222 = vpop.permute.xlu0 %1221
        %v1226 = vsel %vm584, %v1216, 0
        %v1229 = vsel %vm584, %v1218, 0
        %1231 = vmatprep.subr.mxu0 0.0
        %1232 = vmatpush1.msra.mxu0 %v1220
        %1233 = vmatprep.subr.mxu0 0.0
        %1234 = vmatpush1.msra.mxu0 %v1222
        %1235 = vmatprep.subr.mxu0 0.0
        %1236 = vmatpush1.msra.mxu0 0.0
        %1237 = vmatprep.subr.mxu0 0.0
        %1238 = vmatpush1.msra.mxu0 0.0
        %1239 = vmatprep.subr.mxu0 0.0
        %1240 = vmatpush1.msra.mxu0 0.0
        %1241 = vmatprep.subr.mxu0 0.0
        %1242 = vmatpush1.msra.mxu0 0.0
        %1243 = vmatprep.subr.mxu0 0.0
        %1244 = vmatpush1.msra.mxu0 0.0
        %1245 = vmatprep.subr.mxu0 0.0
        %1246 = vmatpush1.msra.mxu0 0.0
        %1247 = vmatprep.subr.mxu0 0.0
        %1248 = vmatpush1.msra.mxu0 0.0
        %1249 = vmatprep.subr.mxu0 0.0
        %1250 = vmatpush1.msra.mxu0 0.0
        %1251 = vmatprep.subr.mxu0 0.0
        %1252 = vmatpush1.msra.mxu0 0.0
        %1253 = vmatprep.subr.mxu0 0.0
        %1254 = vmatpush1.msra.mxu0 0.0
        %1255 = vmatprep.subr.mxu0 0.0
        %1256 = vmatpush1.msra.mxu0 0.0
        %1257 = vmatprep.subr.mxu0 0.0
        %1258 = vmatpush1.msra.mxu0 0.0
        %1259 = vmatprep.subr.mxu0 0.0
        %1260 = vmatpush1.msra.mxu0 0.0
        %1261 = vmatprep.subr.mxu0 0.0
        %1262 = vmatpush1.msra.mxu0 0.0
        %1263 = vmatprep.subr.mxu0 0.0
        %1264 = vmatpush1.msra.mxu0 0.0
        %1265 = vmatprep.subr.mxu0 0.0
        %1266 = vmatpush1.msra.mxu0 0.0
        %1267 = vmatprep.subr.mxu0 0.0
        %1268 = vmatpush1.msra.mxu0 0.0
        %1269 = vmatprep.subr.mxu0 0.0
        %1270 = vmatpush1.msra.mxu0 0.0
        %1271 = vmatprep.subr.mxu0 0.0
        %1272 = vmatpush1.msra.mxu0 0.0
        %1273 = vmatprep.subr.mxu0 0.0
        %1274 = vmatpush1.msra.mxu0 0.0
        %1275 = vmatprep.subr.mxu0 0.0
        %1276 = vmatpush1.msra.mxu0 0.0
        %1277 = vmatprep.subr.mxu0 0.0
        %1278 = vmatpush1.msra.mxu0 0.0
        %1279 = vmatprep.subr.mxu0 0.0
        %1280 = vmatpush1.msra.mxu0 0.0
        %1281 = vmatprep.subr.mxu0 0.0
        %1282 = vmatpush1.msra.mxu0 0.0
        %1283 = vmatprep.subr.mxu0 0.0
        %1284 = vmatpush1.msra.mxu0 0.0
        %1285 = vmatprep.subr.mxu0 0.0
        %1286 = vmatpush1.msra.mxu0 0.0
        %1287 = vmatprep.subr.mxu0 0.0
        %1288 = vmatpush1.msra.mxu0 0.0
        %1289 = vmatprep.subr.mxu0 0.0
        %1290 = vmatpush1.msra.mxu0 0.0
        %1291 = vmatprep.subr.mxu0 0.0
        %1292 = vmatpush1.msra.mxu0 0.0
        %1293 = vmatprep.subr.mxu0 0.0
        %1294 = vmatpush1.msra.mxu0 0.0
        %1295 = vmatprep.mubr.f32.mxu0 0.0
        %1296 = vmatmul.mubr.f32.gmra.mrb[0].mxu0 %v1226
        %v1297 = vpop.f32.mrb[0].mxu0
        %v1298 = vadd.f32 0.0, %v1297
        %v1299 = vpop.f32.mrb[0].mxu0
        %1300 = vmatprep.mubr.f32.mxu0 0.0
        %1301 = vmatmul.mubr.f32.gmra.mrb[0].mxu0 %v1229
        %v1302 = vpop.f32.mrb[0].mxu0
        %v1303 = vadd.f32 0.0, %v1302
        %v1304 = vpop.f32.mrb[0].mxu0
        %1305 = vdwg.mxu0
        %1308 = vrot.lane.b32.xlu0 %v890, 8
        %v1309 = vpop.permute.xlu0 %1308
        %1310 = vrot.lane.b32.xlu0 %v895, 8
        %v1311 = vpop.permute.xlu0 %1310
        %1316 = vrot.lane.b32.xlu0 %v1094, 16
        %v1317 = vpop.permute.xlu0 %1316
        %1318 = vrot.lane.b32.xlu0 %v1099, 16
        %v1319 = vpop.permute.xlu0 %1318
        %1324 = vrot.lane.b32.xlu0 %v1298, 24
        %v1325 = vpop.permute.xlu0 %1324
        %1326 = vrot.lane.b32.xlu0 %v1303, 24
        %v1327 = vpop.permute.xlu0 %1326
        %v1330 = vsel %vm496, %v686, %v1309
        %v1331 = vsel %vm496, %v691, %v1311
        %v1332 = vsel %vm584, %v1330, %v1317
        %v1333 = vsel %vm584, %v1331, %v1319
        %vm1334 = vcmask 195584
        %v1335 = vsel %vm1334, %v1332, %v1325
        %v1336 = vsel %vm1334, %v1333, %v1327
        %v1337 = vld [vmem:[#allocation7] sm:$0xff]
        %v1338 = vld [vmem:[#allocation7 + $0x8] sm:$0xff]
        %v1339 = vld [vmem:[#allocation7 + $0x10] sm:$0xff]
        %v1340 = vld [vmem:[#allocation7 + $0x18] sm:$0xff]
        %v1341 = vld [vmem:[%s6] sm:$0x1]
        %v1343 = vlaneseq
        %v1344 = vshrl.u32 %v1343, 7
        %v1345 = vsub.s32 0, %v1344
        %v1346 = vrot.slane %v1341, %v1345
        %v1349 = vsel %vm328, %v1335, 0
        %v1352 = vsel %vm328, %v1336, 0
        %1354 = vmatprep.subr.mxu0 0.0
        %1355 = vmatpush1.msra.mxu0 %v1337
        %1356 = vmatprep.subr.mxu0 0.0
        %1357 = vmatpush1.msra.mxu0 %v1338
        %1358 = vmatprep.subr.mxu0 0.0
        %1359 = vmatpush1.msra.mxu0 %v1339
        %1360 = vmatprep.subr.mxu0 0.0
        %1361 = vmatpush1.msra.mxu0 %v1340
        %1362 = vmatprep.subr.mxu0 0.0
        %1363 = vmatpush1.msra.mxu0 0.0
        %1364 = vmatprep.subr.mxu0 0.0
        %1365 = vmatpush1.msra.mxu0 0.0
        %1366 = vmatprep.subr.mxu0 0.0
        %1367 = vmatpush1.msra.mxu0 0.0
        %1368 = vmatprep.subr.mxu0 0.0
        %1369 = vmatpush1.msra.mxu0 0.0
        %1370 = vmatprep.subr.mxu0 0.0
        %1371 = vmatpush1.msra.mxu0 0.0
        %1372 = vmatprep.subr.mxu0 0.0
        %1373 = vmatpush1.msra.mxu0 0.0
        %1374 = vmatprep.subr.mxu0 0.0
        %1375 = vmatpush1.msra.mxu0 0.0
        %1376 = vmatprep.subr.mxu0 0.0
        %1377 = vmatpush1.msra.mxu0 0.0
        %1378 = vmatprep.subr.mxu0 0.0
        %1379 = vmatpush1.msra.mxu0 0.0
        %1380 = vmatprep.subr.mxu0 0.0
        %1381 = vmatpush1.msra.mxu0 0.0
        %1382 = vmatprep.subr.mxu0 0.0
        %1383 = vmatpush1.msra.mxu0 0.0
        %1384 = vmatprep.subr.mxu0 0.0
        %1385 = vmatpush1.msra.mxu0 0.0
        %1386 = vmatprep.subr.mxu0 0.0
        %1387 = vmatpush1.msra.mxu0 0.0
        %1388 = vmatprep.subr.mxu0 0.0
        %1389 = vmatpush1.msra.mxu0 0.0
        %1390 = vmatprep.subr.mxu0 0.0
        %1391 = vmatpush1.msra.mxu0 0.0
        %1392 = vmatprep.subr.mxu0 0.0
        %1393 = vmatpush1.msra.mxu0 0.0
        %1394 = vmatprep.subr.mxu0 0.0
        %1395 = vmatpush1.msra.mxu0 0.0
        %1396 = vmatprep.subr.mxu0 0.0
        %1397 = vmatpush1.msra.mxu0 0.0
        %1398 = vmatprep.subr.mxu0 0.0
        %1399 = vmatpush1.msra.mxu0 0.0
        %1400 = vmatprep.subr.mxu0 0.0
        %1401 = vmatpush1.msra.mxu0 0.0
        %1402 = vmatprep.subr.mxu0 0.0
        %1403 = vmatpush1.msra.mxu0 0.0
        %1404 = vmatprep.subr.mxu0 0.0
        %1405 = vmatpush1.msra.mxu0 0.0
        %1406 = vmatprep.subr.mxu0 0.0
        %1407 = vmatpush1.msra.mxu0 0.0
        %1408 = vmatprep.subr.mxu0 0.0
        %1409 = vmatpush1.msra.mxu0 0.0
        %1410 = vmatprep.subr.mxu0 0.0
        %1411 = vmatpush1.msra.mxu0 0.0
        %1412 = vmatprep.subr.mxu0 0.0
        %1413 = vmatpush1.msra.mxu0 0.0
        %1414 = vmatprep.subr.mxu0 0.0
        %1415 = vmatpush1.msra.mxu0 0.0
        %1416 = vmatprep.subr.mxu0 0.0
        %1417 = vmatpush1.msra.mxu0 0.0
        %1418 = vmatprep.mubr.f32.mxu0 0.0
        %1419 = vmatmul.mubr.f32.gmra.mrb[0].mxu0 %v1349
        %v1420 = vpop.f32.mrb[0].mxu0
        %v1421 = vadd.f32 %v1346, %v1420
        %v1422 = vpop.f32.mrb[0].mxu0
        %1423 = vmatprep.mubr.f32.mxu0 0.0
        %1424 = vmatmul.mubr.f32.gmra.mrb[0].mxu0 %v1352
        %v1425 = vpop.f32.mrb[0].mxu0
        %v1426 = vadd.f32 %v1346, %v1425
        %v1427 = vpop.f32.mrb[0].mxu0
        %1428 = vdwg.mxu0
        %1429 = vst.msk [vmem:[%s325] sm:$0xff] %vm328, %v1421
        %1430 = vst.msk [vmem:[%s325 + $0x8] sm:$0xff] %vm328, %v1426
        %s1431 = sand.u32 %s185, 1
        %s1432 = scalar_lea.sflag [#allocation4], %s1431
        %s1433 = sand.u32 %s185, 1
        %s1434 = smul.addr %s1433, 16
        %s1435 = scalar_lea.vmem [#allocation8], %s1434
        // Predicated region
        $region61: #{tpu_custom_call.1} parent=47 // pred_check
          %p1436 = pneg %p195
        $region62: #{tpu_custom_call.1} parent=47 // pred_check_branch
          %1438 = sbr.rel (%p1436) target = $region64
        $region63: #{tpu_custom_call.1} parent=47 // pred_region
          %s1440 = ssub.s32 256, 256
          %1441 = vsyncadd %s1432, %s1440
          %s1442 = smul.addr %s25, 2
          %s1443 = smul.addr %s1442, 128
          %s1444 = scalar_lea.hbm %s7, %s1443
          %s1445 = sshll.u32 %s1435, 4
          %s1446 = int_to_ptr.vmem [resolvable:$true] %s1445
          %1451 = dma.vmem_to_hbm [thread:$0]  %s1446, 256, %s1444, %s1432, 128, 128, 8
        $region64: #{tpu_custom_call.1} parent=47 // pred_fallthru
          _
      $region48: #{tpu_custom_call.1} parent=5 // pred_fallthru
        _
      %p1452 = scmp.le.s32.totalorder 2, %s20
      // Predicated region
      $region65: #{tpu_custom_call.1} parent=5 // pred_check
        %p1453 = pneg %p1452
      $region66: #{tpu_custom_call.1} parent=5 // pred_check_branch
        %1455 = sbr.rel (%p1453) target = $region68
      $region67: #{tpu_custom_call.1} parent=5 // pred_region
        %s1456 = ssub.s32 %s20, 2
        // Predicated region
        $region69: #{tpu_custom_call.1} parent=67 // pred_check
          %p1457 = pneg %p201
        $region70: #{tpu_custom_call.1} parent=67 // pred_check_branch
          %1459 = sbr.rel (%p1457) target = $region72
        $region71: #{tpu_custom_call.1} parent=67 // pred_region
          %s1460 = sand.u32 %s186, 1
          %s1461 = scalar_lea.sflag [#allocation4], %s1460
          %s1462 = sand.u32 %s186, 1
          %s1463 = smul.addr %s1462, 16
          %s1464 = scalar_lea.vmem [#allocation8], %s1463
          %1465 = dma.done %s1461, 256
        $region72: #{tpu_custom_call.1} parent=67 // pred_fallthru
          _
      $region68: #{tpu_custom_call.1} parent=5 // pred_fallthru
        _
    $region6: #{tpu_custom_call.1} parent=1 // loop_footer
      %s24 = sadd.s32 1, %s20
    $region7: #{tpu_custom_call.1} parent=1 // loop_footer_branch
      %19 = sbr.rel target = $region3
    $region8: #{tpu_custom_call.1} parent=1 // loop_exit
      _
    %1466 = vsyncpa [#allocation3], 1
    %s1467 = scalar_lea.sflag [#allocation3], 1
    %1468 = vsyncpa %s1467, 1
    %1469 = vsyncpa [#allocation6], 1
    %1470 = vsyncpa [#allocation4], 1
    %s1471 = scalar_lea.sflag [#allocation4], 1
    %1472 = vsyncpa %s1471, 1

</llo_original>
